<compile_context>
chip_gen: v7x
topology: tpu7x:2x2x1
jax: 0.10.0
libtpu: 0.0.40
codegen_flags: <defaults>
</compile_context>

<pallas_src>
import math
from functools import partial

import jax
import jax.numpy as jnp
from jax.experimental import pallas as pl
from jax.experimental.pallas import tpu as pltpu


def _pick_tile(dim, cap, align):
    """Largest divisor of `dim` <= cap, preferring multiples of `align`.

    If dim <= cap the full dim is used (always layout-legal: tile == array dim).
    Otherwise prefer a divisor that keeps the (8,128) tiling constraint happy.
    """
    if dim <= cap:
        return dim
    candidates = [t for t in range(cap, 0, -1) if dim % t == 0]
    for t in candidates:
        if t % align == 0:
            return t
    return candidates[0]


# ----------------------------------------------------------------------------
# Tiled linear kernel: y = x @ w + b   (w stored as (in, out) = torch W.T)
# ----------------------------------------------------------------------------
def _linear_kernel(x_ref, w_ref, b_ref, o_ref, acc_ref):
    @pl.when(pl.program_id(2) == 0)
    def _init():
        acc_ref[...] = jnp.zeros_like(acc_ref)

    acc_ref[...] += jnp.dot(x_ref[...], w_ref[...],
                            preferred_element_type=jnp.float32)

    @pl.when(pl.program_id(2) == pl.num_programs(2) - 1)
    def _finalize():
        o_ref[...] = (acc_ref[...] + b_ref[...].astype(jnp.float32)
                      ).astype(o_ref.dtype)


def pallas_linear(x2d, w, b, *, tm_target=512, tn_target=512, tk_target=512):
    """x2d: (M, K), w: (K, N), b: (1, N) -> (M, N), tiled + pipelined."""
    M, K = x2d.shape
    K2, N = w.shape
    assert K == K2
    tm = _pick_tile(M, tm_target, align=8)     # sublane dim of x / out blocks
    tn = _pick_tile(N, tn_target, align=128)   # lane dim of w / out blocks
    tk = _pick_tile(K, tk_target, align=128)   # lane dim of x, sublane of w
    grid = (M // tm, N // tn, K // tk)

    itemsize = x2d.dtype.itemsize
    cost = pl.CostEstimate(
        flops=2 * M * N * K,
        transcendentals=0,
        bytes_accessed=(M * K + K * N + N + M * N) * itemsize,
    )
    return pl.pallas_call(
        _linear_kernel,
        out_shape=jax.ShapeDtypeStruct((M, N), x2d.dtype),
        grid=grid,
        in_specs=[
            pl.BlockSpec((tm, tk), lambda i, j, k: (i, k)),
            pl.BlockSpec((tk, tn), lambda i, j, k: (k, j)),
            pl.BlockSpec((1, tn), lambda i, j, k: (0, j)),
        ],
        out_specs=pl.BlockSpec((tm, tn), lambda i, j, k: (i, j)),
        scratch_shapes=[pltpu.VMEM((tm, tn), jnp.float32)],
        compiler_params=pltpu.CompilerParams(
            dimension_semantics=("parallel", "parallel", "arbitrary"),
            vmem_limit_bytes=32 * 1024 * 1024,
        ),
        cost_estimate=cost,
    )(x2d, w, b)


# ----------------------------------------------------------------------------
# Flash-style causal attention: grid (B, H, q-tiles, kv-tiles), online softmax.
# ----------------------------------------------------------------------------
def _flash_attn_kernel(q_ref, k_ref, v_ref, o_ref, m_ref, l_ref, acc_ref,
                       *, scale, block_q, block_kv):
    qi = pl.program_id(2)
    ki = pl.program_id(3)

    @pl.when(ki == 0)
    def _init():
        m_ref[...] = jnp.full_like(m_ref, -jnp.inf)
        l_ref[...] = jnp.zeros_like(l_ref)
        acc_ref[...] = jnp.zeros_like(acc_ref)

    def _step(masked):
        # Fold 1/sqrt(D) into q: O(bq*D) VPU work instead of O(bq*bkv).
        q = q_ref[...].astype(jnp.float32) * scale                    # (bq, D)
        # Contract head_dim of q and k directly -> no k.T / XLU transpose.
        s = jax.lax.dot_general(
            q, k_ref[...].astype(jnp.float32),
            dimension_numbers=(((1,), (1,)), ((), ())),
            preferred_element_type=jnp.float32)                       # (bq, bkv)
        if masked:
            row = qi * block_q + jax.lax.broadcasted_iota(jnp.int32, s.shape, 0)
            col = ki * block_kv + jax.lax.broadcasted_iota(jnp.int32, s.shape, 1)
            s = jnp.where(col <= row, s, -jnp.inf)

        m_prev = m_ref[...]                                            # (bq, 1)
        m_new = jnp.maximum(m_prev, jnp.max(s, axis=-1, keepdims=True))
        alpha = jnp.exp(m_prev - m_new)
        p = jnp.exp(s - m_new)
        l_ref[...] = alpha * l_ref[...] + jnp.sum(p, axis=-1, keepdims=True)
        acc_ref[...] = alpha * acc_ref[...] + jnp.dot(
            p.astype(v_ref.dtype), v_ref[...],
            preferred_element_type=jnp.float32)
        m_ref[...] = m_new

    # kv blocks strictly below the causal diagonal: no mask needed.
    @pl.when(ki < qi)
    def _below():
        _step(masked=False)

    # Diagonal block: apply iota mask and finalize. Blocks above the diagonal
    # (ki > qi) are skipped entirely (compute, and — via the clamped kv
    # index_map — DMA), so this is the last processed block for this q tile.
    @pl.when(ki == qi)
    def _diag():
        _step(masked=True)
        # One (bq,1) reciprocal after the PV matmul instead of dividing the
        # (bq,bkv) p tile. approx=False keeps the numeric check tight; flip to
        # approx=True in production to push the reciprocal onto the EUP slot.
        inv_l = pl.reciprocal(l_ref[...], approx=False)
        o_ref[...] = (acc_ref[...] * inv_l).astype(o_ref.dtype)


def pallas_causal_attention(q, k, v, *, block_target=128):
    """q, k, v: (B, H, T, D) -> (B, H, T, D), causal softmax attention."""
    B, H, T, D = q.shape
    scale = 1.0 / math.sqrt(D)
    blk = _pick_tile(T, block_target, align=8)
    nq = T // blk
    grid = (B, H, nq, nq)

    q_spec = pl.BlockSpec((None, None, blk, D),
                          lambda b, h, qi, ki: (b, h, qi, 0))
    # Clamp the kv block index to the q block: steps above the diagonal
    # re-reference the already-resident block (no extra DMA) and are skipped
    # in compute by pl.when above.
    kv_spec = pl.BlockSpec((None, None, blk, D),
                           lambda b, h, qi, ki: (b, h, jnp.minimum(ki, qi), 0))
    o_spec = pl.BlockSpec((None, None, blk, D),
                          lambda b, h, qi, ki: (b, h, qi, 0))

    itemsize = q.dtype.itemsize
    cost = pl.CostEstimate(
        flops=2 * B * H * T * T * D,            # ~causal half of dense 4*B*H*T^2*D
        transcendentals=B * H * T * T // 2,
        bytes_accessed=4 * B * H * T * D * itemsize,
    )
    return pl.pallas_call(
        partial(_flash_attn_kernel, scale=scale, block_q=blk, block_kv=blk),
        out_shape=jax.ShapeDtypeStruct((B, H, T, D), q.dtype),
        grid=grid,
        in_specs=[q_spec, kv_spec, kv_spec],
        out_specs=o_spec,
        scratch_shapes=[
            pltpu.VMEM((blk, 1), jnp.float32),   # running max m
            pltpu.VMEM((blk, 1), jnp.float32),   # running denom l
            pltpu.VMEM((blk, D), jnp.float32),   # output accumulator
        ],
        compiler_params=pltpu.CompilerParams(
            dimension_semantics=("parallel", "parallel", "parallel", "arbitrary"),
            vmem_limit_bytes=32 * 1024 * 1024,
        ),
        cost_estimate=cost,
    )(q, k, v)


# ----------------------------------------------------------------------------
# Full module forward (glue in plain JAX, hot paths in Pallas).
# ----------------------------------------------------------------------------
def causal_self_attention_forward(x, attention_mask, params, n_head):
    # attention_mask is unused on purpose: the module's flash branch calls
    # scaled_dot_product_attention with attn_mask=None, is_causal=True.
    del attention_mask
    B, T, C = x.shape
    D = C // n_head

    # qkv projection (Pallas tiled matmul).
    qkv = pallas_linear(x.reshape(B * T, C), params["w_attn"], params["b_attn"])
    qkv = qkv.reshape(B, T, 3, n_head, D)

    # (B, T, 3, H, D) -> three (B, H, T, D). For D % 128 == 0 these transposes
    # could be folded into the attention BlockSpec index_map (pure DMA
    # addressing); kept explicit so arbitrary head_dim stays layout-legal.
    q = qkv[:, :, 0].transpose(0, 2, 1, 3)
    k = qkv[:, :, 1].transpose(0, 2, 1, 3)
    v = qkv[:, :, 2].transpose(0, 2, 1, 3)

    # Causal SDPA (dropout_p = 0 in eval mode).
    y = pallas_causal_attention(q, k, v)

    # Merge heads and output projection.
    y = y.transpose(0, 2, 1, 3).reshape(B * T, C)
    y = pallas_linear(y, params["w_proj"], params["b_proj"])
    # TODO(synk): attn_dropout / resid_dropout are identity in eval mode; training-mode dropout not modeled.
    return y.reshape(B, T, C)


# ----------------------------------------------------------------------------
# Pure-JAX reference for sanity checking.
# ----------------------------------------------------------------------------
def reference_forward(x, params, n_head):
    B, T, C = x.shape
    D = C // n_head
    qkv = x.reshape(B * T, C) @ params["w_attn"] + params["b_attn"]
    qkv = qkv.reshape(B, T, 3 * C)
    q, k, v = jnp.split(qkv, 3, axis=2)
    q = q.reshape(B, T, n_head, D).transpose(0, 2, 1, 3)
    k = k.reshape(B, T, n_head, D).transpose(0, 2, 1, 3)
    v = v.reshape(B, T, n_head, D).transpose(0, 2, 1, 3)
    s = jnp.einsum("bhqd,bhkd->bhqk", q, k) / math.sqrt(D)
    mask = jnp.tril(jnp.ones((T, T), dtype=bool))
    s = jnp.where(mask[None, None], s, -jnp.inf)
    p = jax.nn.softmax(s, axis=-1)
    y = jnp.einsum("bhqk,bhkd->bhqd", p, v)
    y = y.transpose(0, 2, 1, 3).reshape(B * T, C)
    y = y @ params["w_proj"] + params["b_proj"]
    return y.reshape(B, T, C)


def _run_check(B, T, C, n_head, *, atol, rtol):
    key = jax.random.PRNGKey(0)
    kx, kwa, kba, kwp, kbp = jax.random.split(key, 5)

    x = jax.random.normal(kx, (B, T, C), dtype=jnp.float32)
    attention_mask = jnp.ones((B, T), dtype=jnp.float32)  # unused (flash path)

    # torch Linear weight (out, in) stored transposed as (in, out).
    params = {
        "w_attn": 0.02 * jax.random.normal(kwa, (C, 3 * C), dtype=jnp.float32),
        "b_attn": 0.02 * jax.random.normal(kba, (1, 3 * C), dtype=jnp.float32),
        "w_proj": 0.02 * jax.random.normal(kwp, (C, C), dtype=jnp.float32),
        "b_proj": 0.02 * jax.random.normal(kbp, (1, C), dtype=jnp.float32),
    }

    fwd = jax.jit(causal_self_attention_forward, static_argnums=(3,))
    y = fwd(x, attention_mask, params, n_head)
    y = jax.block_until_ready(y)

    y_ref = reference_forward(x, params, n_head)
    assert y.shape == (B, T, C)
    max_err = float(jnp.max(jnp.abs(y - y_ref)))
    assert jnp.allclose(y, y_ref, atol=atol, rtol=rtol), (
        f"mismatch vs reference at B={B} T={T} C={C} H={n_head}: "
        f"max abs err {max_err}")
    return y


if __name__ == "__main__":
    # Small config consistent with the module (n_embd % n_head == 0, bias=True).
    _run_check(2, 8, 32, 4, atol=2e-4, rtol=2e-3)
    # Slightly larger, 128-aligned config to exercise the multi-block flash
    # path (2 q-tiles x 2 kv-tiles, causal block skipping) and N-tiled linear.
    _run_check(1, 256, 256, 2, atol=2e-4, rtol=2e-3)
    print("KERNEL_OK")
</pallas_src>

<mosaic_0001>
module attributes {stable_mosaic.version = 11 : i64} {
  func.func @_linear_kernel(%arg0: i32, %arg1: i32, %arg2: i32, %arg3: memref<16x32xf32, #tpu.memory_space<vmem>>, %arg4: memref<32x96xf32, #tpu.memory_space<vmem>>, %arg5: memref<1x96xf32, #tpu.memory_space<vmem>>, %arg6: memref<16x96xf32, #tpu.memory_space<vmem>>, %arg7: memref<16x96xf32, #tpu.memory_space<vmem>>) attributes {dimension_semantics = [#tpu.dimension_semantics<parallel>, #tpu.dimension_semantics<parallel>, #tpu.dimension_semantics<arbitrary>], iteration_bounds = array<i64: 1, 1, 1>, scalar_prefetch = 0 : i64, scratch_operands = 1 : i64, tpu.core_type = #tpu.core_type<tc>, window_params = [{transform_indices = @transform_0, window_bounds = array<i64: 16, 32>}, {transform_indices = @transform_1, window_bounds = array<i64: 32, 96>}, {transform_indices = @transform_2, window_bounds = array<i64: 1, 96>}, {transform_indices = @transform_3, window_bounds = array<i64: 16, 96>}]} {
    %c0_i32 = arith.constant 0 : i32
    %0 = arith.cmpi eq, %arg2, %c0_i32 : i32
    %1 = arith.extui %0 : i1 to i32
    %c0_i32_0 = arith.constant 0 : i32
    %2 = arith.cmpi ne, %1, %c0_i32_0 : i32
    scf.if %2 {
      %cst_10 = arith.constant 0.000000e+00 : f32
      %12 = vector.broadcast %cst_10 : f32 to vector<16x96xf32>
      %c0_11 = arith.constant 0 : index
      %c0_12 = arith.constant 0 : index
      %13 = vector.load %arg7[%c0_11, %c0_12] : memref<16x96xf32, #tpu.memory_space<vmem>>, vector<16x96xf32>
      tpu.vector_store %arg7[%c0_11, %c0_12], %12 {strides = array<i32>} : memref<16x96xf32, #tpu.memory_space<vmem>>, vector<16x96xf32>,
    } else {
    }
    %c0 = arith.constant 0 : index
    %c0_1 = arith.constant 0 : index
    %3 = vector.load %arg7[%c0, %c0_1] : memref<16x96xf32, #tpu.memory_space<vmem>>, vector<16x96xf32>
    %c0_2 = arith.constant 0 : index
    %c0_3 = arith.constant 0 : index
    %4 = vector.load %arg3[%c0_2, %c0_3] : memref<16x32xf32, #tpu.memory_space<vmem>>, vector<16x32xf32>
    %c0_4 = arith.constant 0 : index
    %c0_5 = arith.constant 0 : index
    %5 = vector.load %arg4[%c0_4, %c0_5] : memref<32x96xf32, #tpu.memory_space<vmem>>, vector<32x96xf32>
    %cst = arith.constant dense<0.000000e+00> : vector<16x96xf32>
    %6 = tpu.matmul %4, %5, %cst {dimension_numbers = #tpu.dot_dimension_numbers<[1], [0], [0], [1], [0, 0, 1, 1], [], []>} : vector<16x32xf32>, vector<32x96xf32>, vector<16x96xf32> -> vector<16x96xf32>
    %7 = arith.addf %3, %6 : vector<16x96xf32>
    %c0_6 = arith.constant 0 : index
    %c0_7 = arith.constant 0 : index
    %8 = vector.load %arg7[%c0_6, %c0_7] : memref<16x96xf32, #tpu.memory_space<vmem>>, vector<16x96xf32>
    tpu.vector_store %arg7[%c0_6, %c0_7], %7 {strides = array<i32>} : memref<16x96xf32, #tpu.memory_space<vmem>>, vector<16x96xf32>,
    %c0_i32_8 = arith.constant 0 : i32
    %9 = arith.cmpi eq, %arg2, %c0_i32_8 : i32
    %10 = arith.extui %9 : i1 to i32
    %c0_i32_9 = arith.constant 0 : i32
    %11 = arith.cmpi ne, %10, %c0_i32_9 : i32
    scf.if %11 {
      %c0_10 = arith.constant 0 : index
      %c0_11 = arith.constant 0 : index
      %12 = vector.load %arg7[%c0_10, %c0_11] : memref<16x96xf32, #tpu.memory_space<vmem>>, vector<16x96xf32>
      %c0_12 = arith.constant 0 : index
      %c0_13 = arith.constant 0 : index
      %13 = vector.load %arg5[%c0_12, %c0_13] : memref<1x96xf32, #tpu.memory_space<vmem>>, vector<1x96xf32>
      %14 = vector.broadcast %13 : vector<1x96xf32> to vector<16x96xf32>
      %15 = arith.addf %12, %14 : vector<16x96xf32>
      %c0_14 = arith.constant 0 : index
      %c0_15 = arith.constant 0 : index
      %16 = vector.load %arg6[%c0_14, %c0_15] : memref<16x96xf32, #tpu.memory_space<vmem>>, vector<16x96xf32>
      tpu.vector_store %arg6[%c0_14, %c0_15], %15 {strides = array<i32>} : memref<16x96xf32, #tpu.memory_space<vmem>>, vector<16x96xf32>,
    } else {
    }
    return
  }
  func.func @transform_0(%arg0: i32, %arg1: i32, %arg2: i32) -> (i32, i32) {
    %c0_i32 = arith.constant 0 : i32
    return %arg0, %arg2 : i32, i32
  }
  func.func @transform_1(%arg0: i32, %arg1: i32, %arg2: i32) -> (i32, i32) {
    %c0_i32 = arith.constant 0 : i32
    return %arg2, %arg1 : i32, i32
  }
  func.func @transform_2(%arg0: i32, %arg1: i32, %arg2: i32) -> (i32, i32) {
    %c0_i32 = arith.constant 0 : i32
    %c0_i32_0 = arith.constant 0 : i32
    return %c0_i32, %arg1 : i32, i32
  }
  func.func @transform_3(%arg0: i32, %arg1: i32, %arg2: i32) -> (i32, i32) {
    %c0_i32 = arith.constant 0 : i32
    return %arg0, %arg1 : i32, i32
  }
}

module attributes {stable_mosaic.version = 11 : i64} {
  func.func @_linear_kernel(%arg0: i32, %arg1: i32, %arg2: i32, %arg3: memref<16x32xf32, #tpu.memory_space<vmem>>, %arg4: memref<32x32xf32, #tpu.memory_space<vmem>>, %arg5: memref<1x32xf32, #tpu.memory_space<vmem>>, %arg6: memref<16x32xf32, #tpu.memory_space<vmem>>, %arg7: memref<16x32xf32, #tpu.memory_space<vmem>>) attributes {dimension_semantics = [#tpu.dimension_semantics<parallel>, #tpu.dimension_semantics<parallel>, #tpu.dimension_semantics<arbitrary>], iteration_bounds = array<i64: 1, 1, 1>, scalar_prefetch = 0 : i64, scratch_operands = 1 : i64, tpu.core_type = #tpu.core_type<tc>, window_params = [{transform_indices = @transform_0, window_bounds = array<i64: 16, 32>}, {transform_indices = @transform_1, window_bounds = array<i64: 32, 32>}, {transform_indices = @transform_2, window_bounds = array<i64: 1, 32>}, {transform_indices = @transform_3, window_bounds = array<i64: 16, 32>}]} {
    %c0_i32 = arith.constant 0 : i32
    %0 = arith.cmpi eq, %arg2, %c0_i32 : i32
    %1 = arith.extui %0 : i1 to i32
    %c0_i32_0 = arith.constant 0 : i32
    %2 = arith.cmpi ne, %1, %c0_i32_0 : i32
    scf.if %2 {
      %cst_10 = arith.constant 0.000000e+00 : f32
      %12 = vector.broadcast %cst_10 : f32 to vector<16x32xf32>
      %c0_11 = arith.constant 0 : index
      %c0_12 = arith.constant 0 : index
      %13 = vector.load %arg7[%c0_11, %c0_12] : memref<16x32xf32, #tpu.memory_space<vmem>>, vector<16x32xf32>
      tpu.vector_store %arg7[%c0_11, %c0_12], %12 {strides = array<i32>} : memref<16x32xf32, #tpu.memory_space<vmem>>, vector<16x32xf32>,
    } else {
    }
    %c0 = arith.constant 0 : index
    %c0_1 = arith.constant 0 : index
    %3 = vector.load %arg7[%c0, %c0_1] : memref<16x32xf32, #tpu.memory_space<vmem>>, vector<16x32xf32>
    %c0_2 = arith.constant 0 : index
    %c0_3 = arith.constant 0 : index
    %4 = vector.load %arg3[%c0_2, %c0_3] : memref<16x32xf32, #tpu.memory_space<vmem>>, vector<16x32xf32>
    %c0_4 = arith.constant 0 : index
    %c0_5 = arith.constant 0 : index
    %5 = vector.load %arg4[%c0_4, %c0_5] : memref<32x32xf32, #tpu.memory_space<vmem>>, vector<32x32xf32>
    %cst = arith.constant dense<0.000000e+00> : vector<16x32xf32>
    %6 = tpu.matmul %4, %5, %cst {dimension_numbers = #tpu.dot_dimension_numbers<[1], [0], [0], [1], [0, 0, 1, 1], [], []>} : vector<16x32xf32>, vector<32x32xf32>, vector<16x32xf32> -> vector<16x32xf32>
    %7 = arith.addf %3, %6 : vector<16x32xf32>
    %c0_6 = arith.constant 0 : index
    %c0_7 = arith.constant 0 : index
    %8 = vector.load %arg7[%c0_6, %c0_7] : memref<16x32xf32, #tpu.memory_space<vmem>>, vector<16x32xf32>
    tpu.vector_store %arg7[%c0_6, %c0_7], %7 {strides = array<i32>} : memref<16x32xf32, #tpu.memory_space<vmem>>, vector<16x32xf32>,
    %c0_i32_8 = arith.constant 0 : i32
    %9 = arith.cmpi eq, %arg2, %c0_i32_8 : i32
    %10 = arith.extui %9 : i1 to i32
    %c0_i32_9 = arith.constant 0 : i32
    %11 = arith.cmpi ne, %10, %c0_i32_9 : i32
    scf.if %11 {
      %c0_10 = arith.constant 0 : index
      %c0_11 = arith.constant 0 : index
      %12 = vector.load %arg7[%c0_10, %c0_11] : memref<16x32xf32, #tpu.memory_space<vmem>>, vector<16x32xf32>
      %c0_12 = arith.constant 0 : index
      %c0_13 = arith.constant 0 : index
      %13 = vector.load %arg5[%c0_12, %c0_13] : memref<1x32xf32, #tpu.memory_space<vmem>>, vector<1x32xf32>
      %14 = vector.broadcast %13 : vector<1x32xf32> to vector<16x32xf32>
      %15 = arith.addf %12, %14 : vector<16x32xf32>
      %c0_14 = arith.constant 0 : index
      %c0_15 = arith.constant 0 : index
      %16 = vector.load %arg6[%c0_14, %c0_15] : memref<16x32xf32, #tpu.memory_space<vmem>>, vector<16x32xf32>
      tpu.vector_store %arg6[%c0_14, %c0_15], %15 {strides = array<i32>} : memref<16x32xf32, #tpu.memory_space<vmem>>, vector<16x32xf32>,
    } else {
    }
    return
  }
  func.func @transform_0(%arg0: i32, %arg1: i32, %arg2: i32) -> (i32, i32) {
    %c0_i32 = arith.constant 0 : i32
    return %arg0, %arg2 : i32, i32
  }
  func.func @transform_1(%arg0: i32, %arg1: i32, %arg2: i32) -> (i32, i32) {
    %c0_i32 = arith.constant 0 : i32
    return %arg2, %arg1 : i32, i32
  }
  func.func @transform_2(%arg0: i32, %arg1: i32, %arg2: i32) -> (i32, i32) {
    %c0_i32 = arith.constant 0 : i32
    %c0_i32_0 = arith.constant 0 : i32
    return %c0_i32, %arg1 : i32, i32
  }
  func.func @transform_3(%arg0: i32, %arg1: i32, %arg2: i32) -> (i32, i32) {
    %c0_i32 = arith.constant 0 : i32
    return %arg0, %arg1 : i32, i32
  }
}

module attributes {stable_mosaic.version = 11 : i64} {
  func.func @_flash_attn_kernel(%arg0: i32, %arg1: i32, %arg2: i32, %arg3: i32, %arg4: memref<1x1x8x8xf32, #tpu.memory_space<vmem>>, %arg5: memref<1x1x8x8xf32, #tpu.memory_space<vmem>>, %arg6: memref<1x1x8x8xf32, #tpu.memory_space<vmem>>, %arg7: memref<1x1x8x8xf32, #tpu.memory_space<vmem>>, %arg8: memref<8x1xf32, #tpu.memory_space<vmem>>, %arg9: memref<8x1xf32, #tpu.memory_space<vmem>>, %arg10: memref<8x8xf32, #tpu.memory_space<vmem>>) attributes {dimension_semantics = [#tpu.dimension_semantics<parallel>, #tpu.dimension_semantics<parallel>, #tpu.dimension_semantics<parallel>, #tpu.dimension_semantics<arbitrary>], iteration_bounds = array<i64: 2, 4, 1, 1>, scalar_prefetch = 0 : i64, scratch_operands = 3 : i64, tpu.core_type = #tpu.core_type<tc>, window_params = [{transform_indices = @transform_0, window_bounds = array<i64: 1, 1, 8, 8>}, {transform_indices = @transform_1, window_bounds = array<i64: 1, 1, 8, 8>}, {transform_indices = @transform_2, window_bounds = array<i64: 1, 1, 8, 8>}, {transform_indices = @transform_3, window_bounds = array<i64: 1, 1, 8, 8>}]} {
    %c0_i32 = arith.constant 0 : i32
    %0 = arith.cmpi eq, %arg3, %c0_i32 : i32
    %1 = arith.extui %0 : i1 to i32
    %c0_i32_0 = arith.constant 0 : i32
    %2 = arith.cmpi ne, %1, %c0_i32_0 : i32
    scf.if %2 {
      %cst = arith.constant 0xFF800000 : f32
      %9 = vector.broadcast %cst : f32 to vector<8x1xf32>
      %c0 = arith.constant 0 : index
      %c0_3 = arith.constant 0 : index
      %10 = vector.load %arg8[%c0, %c0_3] : memref<8x1xf32, #tpu.memory_space<vmem>>, vector<8x1xf32>
      tpu.vector_store %arg8[%c0, %c0_3], %9 {strides = array<i32>} : memref<8x1xf32, #tpu.memory_space<vmem>>, vector<8x1xf32>,
      %cst_4 = arith.constant 0.000000e+00 : f32
      %11 = vector.broadcast %cst_4 : f32 to vector<8x1xf32>
      %c0_5 = arith.constant 0 : index
      %c0_6 = arith.constant 0 : index
      %12 = vector.load %arg9[%c0_5, %c0_6] : memref<8x1xf32, #tpu.memory_space<vmem>>, vector<8x1xf32>
      tpu.vector_store %arg9[%c0_5, %c0_6], %11 {strides = array<i32>} : memref<8x1xf32, #tpu.memory_space<vmem>>, vector<8x1xf32>,
      %cst_7 = arith.constant 0.000000e+00 : f32
      %13 = vector.broadcast %cst_7 : f32 to vector<8x8xf32>
      %c0_8 = arith.constant 0 : index
      %c0_9 = arith.constant 0 : index
      %14 = vector.load %arg10[%c0_8, %c0_9] : memref<8x8xf32, #tpu.memory_space<vmem>>, vector<8x8xf32>
      tpu.vector_store %arg10[%c0_8, %c0_9], %13 {strides = array<i32>} : memref<8x8xf32, #tpu.memory_space<vmem>>, vector<8x8xf32>,
    } else {
    }
    %3 = arith.cmpi slt, %arg3, %arg2 : i32
    %4 = arith.extui %3 : i1 to i32
    %c0_i32_1 = arith.constant 0 : i32
    %5 = arith.cmpi ne, %4, %c0_i32_1 : i32
    scf.if %5 {
      %c0 = arith.constant 0 : index
      %c0_3 = arith.constant 0 : index
      %c0_4 = arith.constant 0 : index
      %c0_5 = arith.constant 0 : index
      %9 = vector.load %arg4[%c0, %c0_3, %c0_4, %c0_5] : memref<1x1x8x8xf32, #tpu.memory_space<vmem>>, vector<1x1x8x8xf32>
      %10 = vector.shape_cast %9 : vector<1x1x8x8xf32> to vector<8x8xf32>
      %cst = arith.constant 0.353553385 : f32
      %11 = vector.broadcast %cst : f32 to vector<8x8xf32>
      %12 = arith.mulf %10, %11 : vector<8x8xf32>
      %c0_6 = arith.constant 0 : index
      %c0_7 = arith.constant 0 : index
      %c0_8 = arith.constant 0 : index
      %c0_9 = arith.constant 0 : index
      %13 = vector.load %arg5[%c0_6, %c0_7, %c0_8, %c0_9] : memref<1x1x8x8xf32, #tpu.memory_space<vmem>>, vector<1x1x8x8xf32>
      %14 = vector.shape_cast %13 : vector<1x1x8x8xf32> to vector<8x8xf32>
      %cst_10 = arith.constant dense<0.000000e+00> : vector<8x8xf32>
      %15 = tpu.matmul %12, %14, %cst_10 {dimension_numbers = #tpu.dot_dimension_numbers<[1], [1], [0], [0], [0, 0, 1, 0], [], []>} : vector<8x8xf32>, vector<8x8xf32>, vector<8x8xf32> -> vector<8x8xf32>
      %c0_11 = arith.constant 0 : index
      %c0_12 = arith.constant 0 : index
      %16 = vector.load %arg8[%c0_11, %c0_12] : memref<8x1xf32, #tpu.memory_space<vmem>>, vector<8x1xf32>
      %cst_13 = arith.constant dense<0xFF800000> : vector<8xf32>
      %17 = vector.multi_reduction <maximumf>, %15, %cst_13 [1] : vector<8x8xf32> to vector<8xf32>
      %18 = vector.shape_cast %17 : vector<8xf32> to vector<8x1xf32>
      %19 = arith.maximumf %16, %18 : vector<8x1xf32>
      %20 = arith.subf %16, %19 : vector<8x1xf32>
      %21 = math.exp %20 : vector<8x1xf32>
      %22 = vector.broadcast %19 : vector<8x1xf32> to vector<8x8xf32>
      %23 = arith.subf %15, %22 : vector<8x8xf32>
      %24 = math.exp %23 : vector<8x8xf32>
      %c0_14 = arith.constant 0 : index
      %c0_15 = arith.constant 0 : index
      %25 = vector.load %arg9[%c0_14, %c0_15] : memref<8x1xf32, #tpu.memory_space<vmem>>, vector<8x1xf32>
      %26 = arith.mulf %21, %25 : vector<8x1xf32>
      %cst_16 = arith.constant dense<0.000000e+00> : vector<8xf32>
      %27 = vector.multi_reduction <add>, %24, %cst_16 [1] : vector<8x8xf32> to vector<8xf32>
      %28 = vector.shape_cast %27 : vector<8xf32> to vector<8x1xf32>
      %29 = arith.addf %26, %28 : vector<8x1xf32>
      %c0_17 = arith.constant 0 : index
      %c0_18 = arith.constant 0 : index
      %30 = vector.load %arg9[%c0_17, %c0_18] : memref<8x1xf32, #tpu.memory_space<vmem>>, vector<8x1xf32>
      tpu.vector_store %arg9[%c0_17, %c0_18], %29 {strides = array<i32>} : memref<8x1xf32, #tpu.memory_space<vmem>>, vector<8x1xf32>,
      %c0_19 = arith.constant 0 : index
      %c0_20 = arith.constant 0 : index
      %31 = vector.load %arg10[%c0_19, %c0_20] : memref<8x8xf32, #tpu.memory_space<vmem>>, vector<8x8xf32>
      %32 = vector.broadcast %21 : vector<8x1xf32> to vector<8x8xf32>
      %33 = arith.mulf %32, %31 : vector<8x8xf32>
      %c0_21 = arith.constant 0 : index
      %c0_22 = arith.constant 0 : index
      %c0_23 = arith.constant 0 : index
      %c0_24 = arith.constant 0 : index
      %34 = vector.load %arg6[%c0_21, %c0_22, %c0_23, %c0_24] : memref<1x1x8x8xf32, #tpu.memory_space<vmem>>, vector<1x1x8x8xf32>
      %35 = vector.shape_cast %34 : vector<1x1x8x8xf32> to vector<8x8xf32>
      %cst_25 = arith.constant dense<0.000000e+00> : vector<8x8xf32>
      %36 = tpu.matmul %24, %35, %cst_25 {dimension_numbers = #tpu.dot_dimension_numbers<[1], [0], [0], [1], [0, 0, 1, 1], [], []>} : vector<8x8xf32>, vector<8x8xf32>, vector<8x8xf32> -> vector<8x8xf32>
      %37 = arith.addf %33, %36 : vector<8x8xf32>
      %c0_26 = arith.constant 0 : index
      %c0_27 = arith.constant 0 : index
      %38 = vector.load %arg10[%c0_26, %c0_27] : memref<8x8xf32, #tpu.memory_space<vmem>>, vector<8x8xf32>
      tpu.vector_store %arg10[%c0_26, %c0_27], %37 {strides = array<i32>} : memref<8x8xf32, #tpu.memory_space<vmem>>, vector<8x8xf32>,
      %c0_28 = arith.constant 0 : index
      %c0_29 = arith.constant 0 : index
      %39 = vector.load %arg8[%c0_28, %c0_29] : memref<8x1xf32, #tpu.memory_space<vmem>>, vector<8x1xf32>
      tpu.vector_store %arg8[%c0_28, %c0_29], %19 {strides = array<i32>} : memref<8x1xf32, #tpu.memory_space<vmem>>, vector<8x1xf32>,
    } else {
    }
    %6 = arith.cmpi eq, %arg3, %arg2 : i32
    %7 = arith.extui %6 : i1 to i32
    %c0_i32_2 = arith.constant 0 : i32
    %8 = arith.cmpi ne, %7, %c0_i32_2 : i32
    scf.if %8 {
      %c0 = arith.constant 0 : index
      %c0_3 = arith.constant 0 : index
      %c0_4 = arith.constant 0 : index
      %c0_5 = arith.constant 0 : index
      %9 = vector.load %arg4[%c0, %c0_3, %c0_4, %c0_5] : memref<1x1x8x8xf32, #tpu.memory_space<vmem>>, vector<1x1x8x8xf32>
      %10 = vector.shape_cast %9 : vector<1x1x8x8xf32> to vector<8x8xf32>
      %cst = arith.constant 0.353553385 : f32
      %11 = vector.broadcast %cst : f32 to vector<8x8xf32>
      %12 = arith.mulf %10, %11 : vector<8x8xf32>
      %c0_6 = arith.constant 0 : index
      %c0_7 = arith.constant 0 : index
      %c0_8 = arith.constant 0 : index
      %c0_9 = arith.constant 0 : index
      %13 = vector.load %arg5[%c0_6, %c0_7, %c0_8, %c0_9] : memref<1x1x8x8xf32, #tpu.memory_space<vmem>>, vector<1x1x8x8xf32>
      %14 = vector.shape_cast %13 : vector<1x1x8x8xf32> to vector<8x8xf32>
      %cst_10 = arith.constant dense<0.000000e+00> : vector<8x8xf32>
      %15 = tpu.matmul %12, %14, %cst_10 {dimension_numbers = #tpu.dot_dimension_numbers<[1], [1], [0], [0], [0, 0, 1, 0], [], []>} : vector<8x8xf32>, vector<8x8xf32>, vector<8x8xf32> -> vector<8x8xf32>
      %c8_i32 = arith.constant 8 : i32
      %16 = arith.muli %arg2, %c8_i32 : i32
      %17 = tpu.iota {dimensions = array<i32: 0>} : vector<8x8xi32>
      %18 = vector.broadcast %16 : i32 to vector<8x8xi32>
      %19 = arith.addi %18, %17 : vector<8x8xi32>
      %c8_i32_11 = arith.constant 8 : i32
      %20 = arith.muli %arg3, %c8_i32_11 : i32
      %21 = tpu.iota {dimensions = array<i32: 1>} : vector<8x8xi32>
      %22 = vector.broadcast %20 : i32 to vector<8x8xi32>
      %23 = arith.addi %22, %21 : vector<8x8xi32>
      %24 = arith.cmpi sle, %23, %19 : vector<8x8xi32>
      %cst_12 = arith.constant 0xFF800000 : f32
      %25 = vector.broadcast %cst_12 : f32 to vector<8x8xf32>
      %26 = arith.select %24, %15, %25 : vector<8x8xi1>, vector<8x8xf32>
      %c0_13 = arith.constant 0 : index
      %c0_14 = arith.constant 0 : index
      %27 = vector.load %arg8[%c0_13, %c0_14] : memref<8x1xf32, #tpu.memory_space<vmem>>, vector<8x1xf32>
      %cst_15 = arith.constant dense<0xFF800000> : vector<8xf32>
      %28 = vector.multi_reduction <maximumf>, %26, %cst_15 [1] : vector<8x8xf32> to vector<8xf32>
      %29 = vector.shape_cast %28 : vector<8xf32> to vector<8x1xf32>
      %30 = arith.maximumf %27, %29 : vector<8x1xf32>
      %31 = arith.subf %27, %30 : vector<8x1xf32>
      %32 = math.exp %31 : vector<8x1xf32>
      %33 = vector.broadcast %30 : vector<8x1xf32> to vector<8x8xf32>
      %34 = arith.subf %26, %33 : vector<8x8xf32>
      %35 = math.exp %34 : vector<8x8xf32>
      %c0_16 = arith.constant 0 : index
      %c0_17 = arith.constant 0 : index
      %36 = vector.load %arg9[%c0_16, %c0_17] : memref<8x1xf32, #tpu.memory_space<vmem>>, vector<8x1xf32>
      %37 = arith.mulf %32, %36 : vector<8x1xf32>
      %cst_18 = arith.constant dense<0.000000e+00> : vector<8xf32>
      %38 = vector.multi_reduction <add>, %35, %cst_18 [1] : vector<8x8xf32> to vector<8xf32>
      %39 = vector.shape_cast %38 : vector<8xf32> to vector<8x1xf32>
      %40 = arith.addf %37, %39 : vector<8x1xf32>
      %c0_19 = arith.constant 0 : index
      %c0_20 = arith.constant 0 : index
      %41 = vector.load %arg9[%c0_19, %c0_20] : memref<8x1xf32, #tpu.memory_space<vmem>>, vector<8x1xf32>
      tpu.vector_store %arg9[%c0_19, %c0_20], %40 {strides = array<i32>} : memref<8x1xf32, #tpu.memory_space<vmem>>, vector<8x1xf32>,
      %c0_21 = arith.constant 0 : index
      %c0_22 = arith.constant 0 : index
      %42 = vector.load %arg10[%c0_21, %c0_22] : memref<8x8xf32, #tpu.memory_space<vmem>>, vector<8x8xf32>
      %43 = vector.broadcast %32 : vector<8x1xf32> to vector<8x8xf32>
      %44 = arith.mulf %43, %42 : vector<8x8xf32>
      %c0_23 = arith.constant 0 : index
      %c0_24 = arith.constant 0 : index
      %c0_25 = arith.constant 0 : index
      %c0_26 = arith.constant 0 : index
      %45 = vector.load %arg6[%c0_23, %c0_24, %c0_25, %c0_26] : memref<1x1x8x8xf32, #tpu.memory_space<vmem>>, vector<1x1x8x8xf32>
      %46 = vector.shape_cast %45 : vector<1x1x8x8xf32> to vector<8x8xf32>
      %cst_27 = arith.constant dense<0.000000e+00> : vector<8x8xf32>
      %47 = tpu.matmul %35, %46, %cst_27 {dimension_numbers = #tpu.dot_dimension_numbers<[1], [0], [0], [1], [0, 0, 1, 1], [], []>} : vector<8x8xf32>, vector<8x8xf32>, vector<8x8xf32> -> vector<8x8xf32>
      %48 = arith.addf %44, %47 : vector<8x8xf32>
      %c0_28 = arith.constant 0 : index
      %c0_29 = arith.constant 0 : index
      %49 = vector.load %arg10[%c0_28, %c0_29] : memref<8x8xf32, #tpu.memory_space<vmem>>, vector<8x8xf32>
      tpu.vector_store %arg10[%c0_28, %c0_29], %48 {strides = array<i32>} : memref<8x8xf32, #tpu.memory_space<vmem>>, vector<8x8xf32>,
      %c0_30 = arith.constant 0 : index
      %c0_31 = arith.constant 0 : index
      %50 = vector.load %arg8[%c0_30, %c0_31] : memref<8x1xf32, #tpu.memory_space<vmem>>, vector<8x1xf32>
      tpu.vector_store %arg8[%c0_30, %c0_31], %30 {strides = array<i32>} : memref<8x1xf32, #tpu.memory_space<vmem>>, vector<8x1xf32>,
      %c0_32 = arith.constant 0 : index
      %c0_33 = arith.constant 0 : index
      %51 = vector.load %arg9[%c0_32, %c0_33] : memref<8x1xf32, #tpu.memory_space<vmem>>, vector<8x1xf32>
      %52 = tpu.reciprocal %51 : vector<8x1xf32> -> vector<8x1xf32>
      %c0_34 = arith.constant 0 : index
      %c0_35 = arith.constant 0 : index
      %53 = vector.load %arg10[%c0_34, %c0_35] : memref<8x8xf32, #tpu.memory_space<vmem>>, vector<8x8xf32>
      %54 = vector.broadcast %52 : vector<8x1xf32> to vector<8x8xf32>
      %55 = arith.mulf %53, %54 : vector<8x8xf32>
      %c0_36 = arith.constant 0 : index
      %c0_37 = arith.constant 0 : index
      %c0_38 = arith.constant 0 : index
      %c0_39 = arith.constant 0 : index
      %56 = vector.load %arg7[%c0_36, %c0_37, %c0_38, %c0_39] : memref<1x1x8x8xf32, #tpu.memory_space<vmem>>, vector<1x1x8x8xf32>
      %57 = vector.shape_cast %56 : vector<1x1x8x8xf32> to vector<8x8xf32>
      %58 = vector.shape_cast %55 : vector<8x8xf32> to vector<1x1x8x8xf32>
      tpu.vector_store %arg7[%c0_36, %c0_37, %c0_38, %c0_39], %58 {strides = array<i32>} : memref<1x1x8x8xf32, #tpu.memory_space<vmem>>, vector<1x1x8x8xf32>,
    } else {
    }
    return
  }
  func.func @transform_0(%arg0: i32, %arg1: i32, %arg2: i32, %arg3: i32) -> (i32, i32, i32, i32) {
    %c0_i32 = arith.constant 0 : i32
    %c0_i32_0 = arith.constant 0 : i32
    return %arg0, %arg1, %arg2, %c0_i32 : i32, i32, i32, i32
  }
  func.func @transform_1(%arg0: i32, %arg1: i32, %arg2: i32, %arg3: i32) -> (i32, i32, i32, i32) {
    %0 = arith.minsi %arg3, %arg2 : i32
    %c0_i32 = arith.constant 0 : i32
    %c0_i32_0 = arith.constant 0 : i32
    return %arg0, %arg1, %0, %c0_i32 : i32, i32, i32, i32
  }
  func.func @transform_2(%arg0: i32, %arg1: i32, %arg2: i32, %arg3: i32) -> (i32, i32, i32, i32) {
    %0 = arith.minsi %arg3, %arg2 : i32
    %c0_i32 = arith.constant 0 : i32
    %c0_i32_0 = arith.constant 0 : i32
    return %arg0, %arg1, %0, %c0_i32 : i32, i32, i32, i32
  }
  func.func @transform_3(%arg0: i32, %arg1: i32, %arg2: i32, %arg3: i32) -> (i32, i32, i32, i32) {
    %c0_i32 = arith.constant 0 : i32
    %c0_i32_0 = arith.constant 0 : i32
    return %arg0, %arg1, %arg2, %c0_i32 : i32, i32, i32, i32
  }
}

</mosaic_0001>

<llo_original>
// kernel: causal_self_attention_forward.5
$region0: #{causal_self_attention_forward.5}
  #allocation0 [shape = 'u32[]', space=smem, size = 0x4, offset = 0x4, fixed_abs, tag = 'smem constant byte address 0x4 - core index']
  #allocation1 [shape = 'u32[144,128]{1,0:T(1,128)}', space=vmem, size = 0x12000, scoped, tag = 'internal scratch']
  #allocation2 [shape = 'f32[16,32]{1,0:T(8,128)}', space=vmem, size = 0x2000, scoped, tag = 'scratch operand']
  %s0 = inlined_call_operand.vmem [shape: f32[16,32], index: 0, kind: input, shape index: {}]
  %s1 = inlined_call_operand.vmem [shape: f32[32,32], index: 1, kind: input, shape index: {}]
  %s2 = inlined_call_operand.vmem [shape: f32[1,32], index: 2, kind: input, shape index: {}]
  %s3 = inlined_call_operand.hbm [shape: f32[16,32], index: 3, kind: output, shape index: {}]
  %s4 = sld [smem:[#allocation0]]
  $region30: #{causal_self_attention_forward.5} parent=0
    _
  %s6 = ssub.s32 1, %s4
  %s7 = scalar_select 0, %s6, %s4
  $region1: #{causal_self_attention_forward.5} parent=0
    #allocation3 [shape = 'u8[8192]{0}', space=vmem, size = 0x2000, scoped, tag = 'output window, operand 0, single buffered']
    #allocation4 [shape = 's32[1]{0}', space=sflag, size = 0x4, scoped, tag = 'scoped memory for causal_self_attention_forward.5']
    %8 = vsyncpa [#allocation4], 0
    // Predicated region
    $region2: #{causal_self_attention_forward.5} parent=1 // pred_check
      _
    $region3: #{causal_self_attention_forward.5} parent=1 // pred_check_branch
      %10 = sbr.rel (0) target = $region5
    $region4: #{causal_self_attention_forward.5} parent=1 // pred_region
      _
    $region5: #{causal_self_attention_forward.5} parent=1 // pred_fallthru
      _
    // Predicated region
    $region6: #{causal_self_attention_forward.5} parent=1 // pred_check
      _
    $region7: #{causal_self_attention_forward.5} parent=1 // pred_check_branch
      %12 = sbr.rel (0) target = $region9
    $region8: #{causal_self_attention_forward.5} parent=1 // pred_region
      _
    $region9: #{causal_self_attention_forward.5} parent=1 // pred_fallthru
      _
    // Predicated region
    $region10: #{causal_self_attention_forward.5} parent=1 // pred_check
      _
    $region11: #{causal_self_attention_forward.5} parent=1 // pred_check_branch
      %14 = sbr.rel (0) target = $region13
    $region12: #{causal_self_attention_forward.5} parent=1 // pred_region
      _
    $region13: #{causal_self_attention_forward.5} parent=1 // pred_fallthru
      _
    %p15 = scmp.eq.s32.totalorder 0, 0
    // Predicated region
    $region14: #{causal_self_attention_forward.5} parent=1 // pred_check
      %p16 = pneg %p15
    $region15: #{causal_self_attention_forward.5} parent=1 // pred_check_branch
      %18 = sbr.rel (%p16) target = $region17
    $region16: #{causal_self_attention_forward.5} parent=1 // pred_region
      %vm19 = vcmask 261120
      %20 = vst.msk [vmem:[#allocation2] sm:$0xff] %vm19, 0.0
      %21 = vst.msk [vmem:[#allocation2 + $0x8] sm:$0xff] %vm19, 0.0
    $region17: #{causal_self_attention_forward.5} parent=1 // pred_fallthru
      _
    %v22 = vld [vmem:[#allocation2] sm:$0xff]
    %v23 = vld [vmem:[#allocation2 + $0x8] sm:$0xff]
    %v24 = vld [vmem:[%s0] sm:$0xff]
    %v25 = vld [vmem:[%s0 + $0x8] sm:$0xff]
    %v26 = vld [vmem:[%s1] sm:$0xff]
    %v27 = vld [vmem:[%s1 + $0x8] sm:$0xff]
    %v28 = vld [vmem:[%s1 + $0x10] sm:$0xff]
    %v29 = vld [vmem:[%s1 + $0x18] sm:$0xff]
    %vm30 = vcmask 261120
    %v32 = vsel %vm30, %v24, 0
    %v35 = vsel %vm30, %v25, 0
    %37 = vmatprep.subr.mxu0 0.0
    %38 = vmatpush1.msra.mxu0 %v26
    %39 = vmatprep.subr.mxu0 0.0
    %40 = vmatpush1.msra.mxu0 %v27
    %41 = vmatprep.subr.mxu0 0.0
    %42 = vmatpush1.msra.mxu0 %v28
    %43 = vmatprep.subr.mxu0 0.0
    %44 = vmatpush1.msra.mxu0 %v29
    %45 = vmatprep.subr.mxu0 0.0
    %46 = vmatpush1.msra.mxu0 0.0
    %47 = vmatprep.subr.mxu0 0.0
    %48 = vmatpush1.msra.mxu0 0.0
    %49 = vmatprep.subr.mxu0 0.0
    %50 = vmatpush1.msra.mxu0 0.0
    %51 = vmatprep.subr.mxu0 0.0
    %52 = vmatpush1.msra.mxu0 0.0
    %53 = vmatprep.subr.mxu0 0.0
    %54 = vmatpush1.msra.mxu0 0.0
    %55 = vmatprep.subr.mxu0 0.0
    %56 = vmatpush1.msra.mxu0 0.0
    %57 = vmatprep.subr.mxu0 0.0
    %58 = vmatpush1.msra.mxu0 0.0
    %59 = vmatprep.subr.mxu0 0.0
    %60 = vmatpush1.msra.mxu0 0.0
    %61 = vmatprep.subr.mxu0 0.0
    %62 = vmatpush1.msra.mxu0 0.0
    %63 = vmatprep.subr.mxu0 0.0
    %64 = vmatpush1.msra.mxu0 0.0
    %65 = vmatprep.subr.mxu0 0.0
    %66 = vmatpush1.msra.mxu0 0.0
    %67 = vmatprep.subr.mxu0 0.0
    %68 = vmatpush1.msra.mxu0 0.0
    %69 = vmatprep.subr.mxu0 0.0
    %70 = vmatpush1.msra.mxu0 0.0
    %71 = vmatprep.subr.mxu0 0.0
    %72 = vmatpush1.msra.mxu0 0.0
    %73 = vmatprep.subr.mxu0 0.0
    %74 = vmatpush1.msra.mxu0 0.0
    %75 = vmatprep.subr.mxu0 0.0
    %76 = vmatpush1.msra.mxu0 0.0
    %77 = vmatprep.subr.mxu0 0.0
    %78 = vmatpush1.msra.mxu0 0.0
    %79 = vmatprep.subr.mxu0 0.0
    %80 = vmatpush1.msra.mxu0 0.0
    %81 = vmatprep.subr.mxu0 0.0
    %82 = vmatpush1.msra.mxu0 0.0
    %83 = vmatprep.subr.mxu0 0.0
    %84 = vmatpush1.msra.mxu0 0.0
    %85 = vmatprep.subr.mxu0 0.0
    %86 = vmatpush1.msra.mxu0 0.0
    %87 = vmatprep.subr.mxu0 0.0
    %88 = vmatpush1.msra.mxu0 0.0
    %89 = vmatprep.subr.mxu0 0.0
    %90 = vmatpush1.msra.mxu0 0.0
    %91 = vmatprep.subr.mxu0 0.0
    %92 = vmatpush1.msra.mxu0 0.0
    %93 = vmatprep.subr.mxu0 0.0
    %94 = vmatpush1.msra.mxu0 0.0
    %95 = vmatprep.subr.mxu0 0.0
    %96 = vmatpush1.msra.mxu0 0.0
    %97 = vmatprep.subr.mxu0 0.0
    %98 = vmatpush1.msra.mxu0 0.0
    %99 = vmatprep.subr.mxu0 0.0
    %100 = vmatpush1.msra.mxu0 0.0
    %101 = vmatprep.mubr.f32.mxu0 0.0
    %102 = vmatmul.mubr.f32.gmra.mrb[0].mxu0 %v32
    %v103 = vpop.f32.mrb[0].mxu0
    %v104 = vadd.f32 0.0, %v103
    %v105 = vpop.f32.mrb[0].mxu0
    %106 = vmatprep.mubr.f32.mxu0 0.0
    %107 = vmatmul.mubr.f32.gmra.mrb[0].mxu0 %v35
    %v108 = vpop.f32.mrb[0].mxu0
    %v109 = vadd.f32 0.0, %v108
    %v110 = vpop.f32.mrb[0].mxu0
    %111 = vdwg.mxu0
    %v112 = vadd.f32 %v22, %v104
    %v113 = vadd.f32 %v23, %v109
    %114 = vst.msk [vmem:[#allocation2] sm:$0xff] %vm30, %v112
    %115 = vst.msk [vmem:[#allocation2 + $0x8] sm:$0xff] %vm30, %v113
    // Predicated region
    $region18: #{causal_self_attention_forward.5} parent=1 // pred_check
      %p116 = pneg %p15
    $region19: #{causal_self_attention_forward.5} parent=1 // pred_check_branch
      %118 = sbr.rel (%p116) target = $region21
    $region20: #{causal_self_attention_forward.5} parent=1 // pred_region
      %v119 = vld [vmem:[#allocation2] sm:$0xff]
      %v120 = vld [vmem:[#allocation2 + $0x8] sm:$0xff]
      %v121 = vld [vmem:[%s2] sm:$0x1]
      %v123 = vlaneseq
      %v124 = vshrl.u32 %v123, 7
      %v125 = vsub.s32 0, %v124
      %v126 = vrot.slane %v121, %v125
      %v128 = vadd.f32 %v119, %v126
      %v129 = vadd.f32 %v120, %v126
      %130 = vst.msk [vmem:[#allocation3] sm:$0xff] %vm30, %v128
      %131 = vst.msk [vmem:[#allocation3 + $0x8] sm:$0xff] %vm30, %v129
    $region21: #{causal_self_attention_forward.5} parent=1 // pred_fallthru
      _
    // Predicated region
    $region22: #{causal_self_attention_forward.5} parent=1 // pred_check
      _
    $region23: #{causal_self_attention_forward.5} parent=1 // pred_check_branch
      %133 = sbr.rel (0) target = $region25
    $region24: #{causal_self_attention_forward.5} parent=1 // pred_region
      %s135 = ssub.s32 256, 256
      %136 = vsyncadd [#allocation4], %s135
      %s137 = sshll.u32 [#allocation3], 4
      %s138 = int_to_ptr.vmem [resolvable:$true] %s137
      %143 = dma.vmem_to_hbm [thread:$0]  %s138, 256, %s3, [#allocation4], 128, 128, 8
    $region25: #{causal_self_attention_forward.5} parent=1 // pred_fallthru
      _
    // Predicated region
    $region26: #{causal_self_attention_forward.5} parent=1 // pred_check
      _
    $region27: #{causal_self_attention_forward.5} parent=1 // pred_check_branch
      %145 = sbr.rel (0) target = $region29
    $region28: #{causal_self_attention_forward.5} parent=1 // pred_region
      %146 = dma.done [#allocation4], 256
    $region29: #{causal_self_attention_forward.5} parent=1 // pred_fallthru
      _
    %147 = vsyncpa [#allocation4], 1

// kernel: causal_self_attention_forward.3
$region0: #{causal_self_attention_forward.3}
  #allocation0 [shape = 'u32[]', space=smem, size = 0x4, offset = 0x4, fixed_abs, tag = 'smem constant byte address 0x4 - core index']
  #allocation1 [shape = 'u32[144,128]{1,0:T(1,128)}', space=vmem, size = 0x12000, scoped, tag = 'internal scratch']
  #allocation2 [shape = 'f32[16,96]{1,0:T(8,128)}', space=vmem, size = 0x2000, scoped, tag = 'scratch operand']
  %s0 = inlined_call_operand.hbm [shape: f32[16,32], index: 0, kind: input, shape index: {}]
  %s1 = inlined_call_operand.hbm [shape: f32[32,96], index: 1, kind: input, shape index: {}]
  %s2 = inlined_call_operand.vmem [shape: f32[1,96], index: 2, kind: input, shape index: {}]
  %s3 = inlined_call_operand.vmem [shape: f32[16,96], index: 3, kind: output, shape index: {}]
  %s4 = sld [smem:[#allocation0]]
  $region38: #{causal_self_attention_forward.3} parent=0
    _
  %s6 = ssub.s32 1, %s4
  %s7 = scalar_select 0, %s6, %s4
  $region1: #{causal_self_attention_forward.3} parent=0
    #allocation3 [shape = 'u8[8192]{0}', space=vmem, size = 0x2000, scoped, tag = 'input window, operand 0, single buffered']
    #allocation4 [shape = 's32[1]{0}', space=sflag, size = 0x4, scoped, tag = 'scoped memory for causal_self_attention_forward.3']
    #allocation5 [shape = 'u8[16384]{0}', space=vmem, size = 0x4000, scoped, tag = 'input window, operand 1, single buffered']
    #allocation6 [shape = 's32[1]{0}', space=sflag, size = 0x4, scoped, tag = 'scoped memory for causal_self_attention_forward.3']
    %8 = vsyncpa [#allocation4], 0
    %9 = vsyncpa [#allocation6], 0
    // Predicated region
    $region2: #{causal_self_attention_forward.3} parent=1 // pred_check
      _
    $region3: #{causal_self_attention_forward.3} parent=1 // pred_check_branch
      %11 = sbr.rel (0) target = $region5
    $region4: #{causal_self_attention_forward.3} parent=1 // pred_region
      %s13 = ssub.s32 256, 256
      %14 = vsyncadd [#allocation4], %s13
      %s15 = sshll.u32 [#allocation3], 4
      %s16 = int_to_ptr.vmem [resolvable:$true] %s15
      %21 = dma.hbm_to_vmem [thread:$0]  %s0, 256, %s16, [#allocation4], 128, 128, 8
    $region5: #{causal_self_attention_forward.3} parent=1 // pred_fallthru
      _
    // Predicated region
    $region6: #{causal_self_attention_forward.3} parent=1 // pred_check
      _
    $region7: #{causal_self_attention_forward.3} parent=1 // pred_check_branch
      %23 = sbr.rel (0) target = $region9
    $region8: #{causal_self_attention_forward.3} parent=1 // pred_region
      %s25 = ssub.s32 512, 512
      %26 = vsyncadd [#allocation6], %s25
      %s27 = sshll.u32 [#allocation5], 4
      %s28 = int_to_ptr.vmem [resolvable:$true] %s27
      %33 = dma.hbm_to_vmem [thread:$0]  %s1, 512, %s28, [#allocation6], 128, 128, 8
    $region9: #{causal_self_attention_forward.3} parent=1 // pred_fallthru
      _
    // Predicated region
    $region10: #{causal_self_attention_forward.3} parent=1 // pred_check
      _
    $region11: #{causal_self_attention_forward.3} parent=1 // pred_check_branch
      %35 = sbr.rel (0) target = $region13
    $region12: #{causal_self_attention_forward.3} parent=1 // pred_region
      _
    $region13: #{causal_self_attention_forward.3} parent=1 // pred_fallthru
      _
    // Predicated region
    $region14: #{causal_self_attention_forward.3} parent=1 // pred_check
      _
    $region15: #{causal_self_attention_forward.3} parent=1 // pred_check_branch
      %37 = sbr.rel (0) target = $region17
    $region16: #{causal_self_attention_forward.3} parent=1 // pred_region
      %38 = dma.done [#allocation4], 256
    $region17: #{causal_self_attention_forward.3} parent=1 // pred_fallthru
      _
    // Predicated region
    $region18: #{causal_self_attention_forward.3} parent=1 // pred_check
      _
    $region19: #{causal_self_attention_forward.3} parent=1 // pred_check_branch
      %40 = sbr.rel (0) target = $region21
    $region20: #{causal_self_attention_forward.3} parent=1 // pred_region
      %41 = dma.done [#allocation6], 512
    $region21: #{causal_self_attention_forward.3} parent=1 // pred_fallthru
      _
    %p42 = scmp.eq.s32.totalorder 0, 0
    // Predicated region
    $region22: #{causal_self_attention_forward.3} parent=1 // pred_check
      %p43 = pneg %p42
    $region23: #{causal_self_attention_forward.3} parent=1 // pred_check_branch
      %45 = sbr.rel (%p43) target = $region25
    $region24: #{causal_self_attention_forward.3} parent=1 // pred_region
      %vm46 = vcmask 785408
      %47 = vst.msk [vmem:[#allocation2] sm:$0xff] %vm46, 0.0
      %48 = vst.msk [vmem:[#allocation2 + $0x8] sm:$0xff] %vm46, 0.0
    $region25: #{causal_self_attention_forward.3} parent=1 // pred_fallthru
      _
    %v49 = vld [vmem:[#allocation2] sm:$0xff]
    %v50 = vld [vmem:[#allocation2 + $0x8] sm:$0xff]
    %v51 = vld [vmem:[#allocation3] sm:$0xff]
    %v52 = vld [vmem:[#allocation3 + $0x8] sm:$0xff]
    %v53 = vld [vmem:[#allocation5] sm:$0xff]
    %v54 = vld [vmem:[#allocation5 + $0x8] sm:$0xff]
    %v55 = vld [vmem:[#allocation5 + $0x10] sm:$0xff]
    %v56 = vld [vmem:[#allocation5 + $0x18] sm:$0xff]
    %vm57 = vcmask 261120
    %v59 = vsel %vm57, %v51, 0
    %v62 = vsel %vm57, %v52, 0
    %64 = vmatprep.subr.mxu0 0.0
    %65 = vmatpush1.msra.mxu0 %v53
    %66 = vmatprep.subr.mxu0 0.0
    %67 = vmatpush1.msra.mxu0 %v54
    %68 = vmatprep.subr.mxu0 0.0
    %69 = vmatpush1.msra.mxu0 %v55
    %70 = vmatprep.subr.mxu0 0.0
    %71 = vmatpush1.msra.mxu0 %v56
    %72 = vmatprep.subr.mxu0 0.0
    %73 = vmatpush1.msra.mxu0 0.0
    %74 = vmatprep.subr.mxu0 0.0
    %75 = vmatpush1.msra.mxu0 0.0
    %76 = vmatprep.subr.mxu0 0.0
    %77 = vmatpush1.msra.mxu0 0.0
    %78 = vmatprep.subr.mxu0 0.0
    %79 = vmatpush1.msra.mxu0 0.0
    %80 = vmatprep.subr.mxu0 0.0
    %81 = vmatpush1.msra.mxu0 0.0
    %82 = vmatprep.subr.mxu0 0.0
    %83 = vmatpush1.msra.mxu0 0.0
    %84 = vmatprep.subr.mxu0 0.0
    %85 = vmatpush1.msra.mxu0 0.0
    %86 = vmatprep.subr.mxu0 0.0
    %87 = vmatpush1.msra.mxu0 0.0
    %88 = vmatprep.subr.mxu0 0.0
    %89 = vmatpush1.msra.mxu0 0.0
    %90 = vmatprep.subr.mxu0 0.0
    %91 = vmatpush1.msra.mxu0 0.0
    %92 = vmatprep.subr.mxu0 0.0
    %93 = vmatpush1.msra.mxu0 0.0
    %94 = vmatprep.subr.mxu0 0.0
    %95 = vmatpush1.msra.mxu0 0.0
    %96 = vmatprep.subr.mxu0 0.0
    %97 = vmatpush1.msra.mxu0 0.0
    %98 = vmatprep.subr.mxu0 0.0
    %99 = vmatpush1.msra.mxu0 0.0
    %100 = vmatprep.subr.mxu0 0.0
    %101 = vmatpush1.msra.mxu0 0.0
    %102 = vmatprep.subr.mxu0 0.0
    %103 = vmatpush1.msra.mxu0 0.0
    %104 = vmatprep.subr.mxu0 0.0
    %105 = vmatpush1.msra.mxu0 0.0
    %106 = vmatprep.subr.mxu0 0.0
    %107 = vmatpush1.msra.mxu0 0.0
    %108 = vmatprep.subr.mxu0 0.0
    %109 = vmatpush1.msra.mxu0 0.0
    %110 = vmatprep.subr.mxu0 0.0
    %111 = vmatpush1.msra.mxu0 0.0
    %112 = vmatprep.subr.mxu0 0.0
    %113 = vmatpush1.msra.mxu0 0.0
    %114 = vmatprep.subr.mxu0 0.0
    %115 = vmatpush1.msra.mxu0 0.0
    %116 = vmatprep.subr.mxu0 0.0
    %117 = vmatpush1.msra.mxu0 0.0
    %118 = vmatprep.subr.mxu0 0.0
    %119 = vmatpush1.msra.mxu0 0.0
    %120 = vmatprep.subr.mxu0 0.0
    %121 = vmatpush1.msra.mxu0 0.0
    %122 = vmatprep.subr.mxu0 0.0
    %123 = vmatpush1.msra.mxu0 0.0
    %124 = vmatprep.subr.mxu0 0.0
    %125 = vmatpush1.msra.mxu0 0.0
    %126 = vmatprep.subr.mxu0 0.0
    %127 = vmatpush1.msra.mxu0 0.0
    %128 = vmatprep.mubr.f32.mxu0 0.0
    %129 = vmatmul.mubr.f32.gmra.mrb[0].mxu0 %v59
    %v130 = vpop.f32.mrb[0].mxu0
    %v131 = vadd.f32 0.0, %v130
    %v132 = vpop.f32.mrb[0].mxu0
    %133 = vmatprep.mubr.f32.mxu0 0.0
    %134 = vmatmul.mubr.f32.gmra.mrb[0].mxu0 %v62
    %v135 = vpop.f32.mrb[0].mxu0
    %v136 = vadd.f32 0.0, %v135
    %v137 = vpop.f32.mrb[0].mxu0
    %138 = vdwg.mxu0
    %v139 = vadd.f32 %v49, %v131
    %v140 = vadd.f32 %v50, %v136
    %vm141 = vcmask 785408
    %142 = vst.msk [vmem:[#allocation2] sm:$0xff] %vm141, %v139
    %143 = vst.msk [vmem:[#allocation2 + $0x8] sm:$0xff] %vm141, %v140
    // Predicated region
    $region26: #{causal_self_attention_forward.3} parent=1 // pred_check
      %p144 = pneg %p42
    $region27: #{causal_self_attention_forward.3} parent=1 // pred_check_branch
      %146 = sbr.rel (%p144) target = $region29
    $region28: #{causal_self_attention_forward.3} parent=1 // pred_region
      %v147 = vld [vmem:[#allocation2] sm:$0xff]
      %v148 = vld [vmem:[#allocation2 + $0x8] sm:$0xff]
      %v149 = vld [vmem:[%s2] sm:$0x1]
      %v151 = vlaneseq
      %v152 = vshrl.u32 %v151, 7
      %v153 = vsub.s32 0, %v152
      %v154 = vrot.slane %v149, %v153
      %v156 = vadd.f32 %v147, %v154
      %v157 = vadd.f32 %v148, %v154
      %158 = vst.msk [vmem:[%s3] sm:$0xff] %vm141, %v156
      %159 = vst.msk [vmem:[%s3 + $0x8] sm:$0xff] %vm141, %v157
    $region29: #{causal_self_attention_forward.3} parent=1 // pred_fallthru
      _
    // Predicated region
    $region30: #{causal_self_attention_forward.3} parent=1 // pred_check
      _
    $region31: #{causal_self_attention_forward.3} parent=1 // pred_check_branch
      %161 = sbr.rel (0) target = $region33
    $region32: #{causal_self_attention_forward.3} parent=1 // pred_region
      _
    $region33: #{causal_self_attention_forward.3} parent=1 // pred_fallthru
      _
    // Predicated region
    $region34: #{causal_self_attention_forward.3} parent=1 // pred_check
      _
    $region35: #{causal_self_attention_forward.3} parent=1 // pred_check_branch
      %163 = sbr.rel (0) target = $region37
    $region36: #{causal_self_attention_forward.3} parent=1 // pred_region
      _
    $region37: #{causal_self_attention_forward.3} parent=1 // pred_fallthru
      _
    %164 = vsyncpa [#allocation4], 1
    %165 = vsyncpa [#allocation6], 1

// kernel: causal_self_attention_forward.4
$region0: #{causal_self_attention_forward.4}
  #allocation0 [shape = 'u32[]', space=smem, size = 0x4, offset = 0x4, fixed_abs, tag = 'smem constant byte address 0x4 - core index']
  #allocation1 [shape = 'u32[144,128]{1,0:T(1,128)}', space=vmem, size = 0x12000, scoped, tag = 'internal scratch']
  #allocation2 [shape = 'f32[8,1]{1,0:T(8,128)}', space=vmem, size = 0x1000, scoped, tag = 'scratch operand']
  #allocation3 [shape = 'f32[8,1]{1,0:T(8,128)}', space=vmem, size = 0x1000, scoped, tag = 'scratch operand']
  #allocation4 [shape = 'f32[8,8]{1,0:T(8,128)}', space=vmem, size = 0x1000, scoped, tag = 'scratch operand']
  %s0 = inlined_call_operand.vmem [shape: f32[2,4,8,8], index: 0, kind: input, shape index: {}]
  %s1 = inlined_call_operand.vmem [shape: f32[2,4,8,8], index: 1, kind: input, shape index: {}]
  %s2 = inlined_call_operand.vmem [shape: f32[2,4,8,8], index: 2, kind: input, shape index: {}]
  %s3 = inlined_call_operand.vmem [shape: f32[2,4,8,8], index: 3, kind: output, shape index: {}]
  %s4 = sld [smem:[#allocation0]]
  $region57: #{causal_self_attention_forward.4} parent=0
    _
  %s6 = ssub.s32 1, %s4
  %s7 = scalar_select 0, %s6, %s4
  loop: start=0, step=1, limit=10
  $region2: #{causal_self_attention_forward.4} parent=0 // loop_pre_header
    _
  $region3: #{causal_self_attention_forward.4} parent=0 // loop_header
    %s9 = sphi 0, %s13
    %p10 = scmp.ge.s32.totalorder %s9, 10
    %s16 = sphi 0, %s42
    %s17 = sphi 0, %s38
    %s18 = sphi 0, %s34
    %s19 = sphi 0, %s30
    %s20 = sphi 0, %s16
    %s21 = sphi 0, %s17
    %s22 = sphi 0, %s18
    %s23 = sphi 0, %s19
    %s24 = sphi 0, %s20
    %s25 = sphi 0, %s21
    %s26 = sphi 0, %s22
    %s27 = sphi 0, %s23
    %s49 = sphi 0, %s51
    %s52 = sphi 0, %s49
    %s53 = sphi 0, %s52
    %s69 = sphi 0, %s53
    %s83 = sphi 0, %s85
    %s86 = sphi 0, %s83
    %s87 = sphi 0, %s86
    %s103 = sphi 0, %s87
    %s117 = sphi 0, %s119
    %s120 = sphi 0, %s117
    %s121 = sphi 0, %s120
    %s137 = sphi 0, %s121
    %s147 = sphi 0, %s149
    %s150 = sphi 0, %s147
    %s151 = sphi 0, %s150
    %s167 = sphi 0, %s151
  $region4: #{causal_self_attention_forward.4} parent=0 // loop_header_branch
    %12 = sbr.rel (%p10) target = $region8
  $region5: #{causal_self_attention_forward.4} parent=0 // loop_body
    %s14 = ssub.s32 %s9, 1
    %s15 = ssub.s32 %s9, 2
    %s28 = sadd.s32 1, %s19
    %p29 = scmp.ge.s32.totalorder %s28, 1
    %s30 = scalar_select %p29, 0, %s28
    %s31 = sadd.s32 1, %s18
    %s32 = scalar_select %p29, %s31, %s18
    %p33 = scmp.ge.s32.totalorder %s32, 1
    %s34 = scalar_select %p33, 0, %s32
    %s35 = sadd.s32 1, %s17
    %s36 = scalar_select %p33, %s35, %s17
    %p37 = scmp.ge.s32.totalorder %s36, 4
    %s38 = scalar_select %p37, 0, %s36
    %s39 = sadd.s32 1, %s16
    %s40 = scalar_select %p37, %s39, %s16
    %p41 = scmp.ge.s32.totalorder %s40, 2
    %s42 = scalar_select %p41, 0, %s40
    %s43 = ssub.s32 %s16, %s42
    %s44 = ssub.s32 %s17, %s38
    %s45 = sor.u32 %s43, %s44
    %s46 = ssub.s32 %s18, %s34
    %s47 = sor.u32 %s45, %s46
    %p48 = scmp.eq.s32.totalorder %s47, 0
    %s50 = sadd.s32 %s49, 1
    %s51 = scalar_select %p48, %s49, %s50
    %p54 = pneg %p48
    %p55 = scmp.eq.s32.totalorder %s9, 7
    %p56 = por %p54, %p55
    %p57 = scmp.ne.s32.totalorder %s49, %s52
    %p58 = scmp.eq.s32.totalorder %s9, 0
    %p59 = por %p57, %p58
    %p60 = scmp.ne.s32.totalorder %s49, %s52
    %p61 = scmp.eq.s32.totalorder %s14, 7
    %p62 = por %p60, %p61
    %p63 = scmp.ne.s32.totalorder %s52, %s53
    %p64 = scmp.eq.s32.totalorder %s14, 0
    %p65 = por %p63, %p64
    %p66 = scmp.ne.s32.totalorder %s52, %s53
    %p67 = scmp.eq.s32.totalorder %s15, 7
    %p68 = por %p66, %p67
    %p70 = scmp.ne.s32.totalorder %s53, %s69
    %p71 = scmp.eq.s32.totalorder %s15, 0
    %p72 = por %p70, %p71
    %p73 = scmp.lt.s32.totalorder %s19, %s18
    %s74 = scalar_select %p73, %s19, %s18
    %p75 = scmp.lt.s32.totalorder %s30, %s34
    %s76 = scalar_select %p75, %s30, %s34
    %s77 = ssub.s32 %s16, %s42
    %s78 = ssub.s32 %s17, %s38
    %s79 = sor.u32 %s77, %s78
    %s80 = ssub.s32 %s74, %s76
    %s81 = sor.u32 %s79, %s80
    %p82 = scmp.eq.s32.totalorder %s81, 0
    %s84 = sadd.s32 %s83, 1
    %s85 = scalar_select %p82, %s83, %s84
    %p88 = pneg %p82
    %p89 = scmp.eq.s32.totalorder %s9, 7
    %p90 = por %p88, %p89
    %p91 = scmp.ne.s32.totalorder %s83, %s86
    %p92 = scmp.eq.s32.totalorder %s9, 0
    %p93 = por %p91, %p92
    %p94 = scmp.ne.s32.totalorder %s83, %s86
    %p95 = scmp.eq.s32.totalorder %s14, 7
    %p96 = por %p94, %p95
    %p97 = scmp.ne.s32.totalorder %s86, %s87
    %p98 = scmp.eq.s32.totalorder %s14, 0
    %p99 = por %p97, %p98
    %p100 = scmp.ne.s32.totalorder %s86, %s87
    %p101 = scmp.eq.s32.totalorder %s15, 7
    %p102 = por %p100, %p101
    %p104 = scmp.ne.s32.totalorder %s87, %s103
    %p105 = scmp.eq.s32.totalorder %s15, 0
    %p106 = por %p104, %p105
    %p107 = scmp.lt.s32.totalorder %s19, %s18
    %s108 = scalar_select %p107, %s19, %s18
    %p109 = scmp.lt.s32.totalorder %s30, %s34
    %s110 = scalar_select %p109, %s30, %s34
    %s111 = ssub.s32 %s16, %s42
    %s112 = ssub.s32 %s17, %s38
    %s113 = sor.u32 %s111, %s112
    %s114 = ssub.s32 %s108, %s110
    %s115 = sor.u32 %s113, %s114
    %p116 = scmp.eq.s32.totalorder %s115, 0
    %s118 = sadd.s32 %s117, 1
    %s119 = scalar_select %p116, %s117, %s118
    %p122 = pneg %p116
    %p123 = scmp.eq.s32.totalorder %s9, 7
    %p124 = por %p122, %p123
    %p125 = scmp.ne.s32.totalorder %s117, %s120
    %p126 = scmp.eq.s32.totalorder %s9, 0
    %p127 = por %p125, %p126
    %p128 = scmp.ne.s32.totalorder %s117, %s120
    %p129 = scmp.eq.s32.totalorder %s14, 7
    %p130 = por %p128, %p129
    %p131 = scmp.ne.s32.totalorder %s120, %s121
    %p132 = scmp.eq.s32.totalorder %s14, 0
    %p133 = por %p131, %p132
    %p134 = scmp.ne.s32.totalorder %s120, %s121
    %p135 = scmp.eq.s32.totalorder %s15, 7
    %p136 = por %p134, %p135
    %p138 = scmp.ne.s32.totalorder %s121, %s137
    %p139 = scmp.eq.s32.totalorder %s15, 0
    %p140 = por %p138, %p139
    %s141 = ssub.s32 %s16, %s42
    %s142 = ssub.s32 %s17, %s38
    %s143 = sor.u32 %s141, %s142
    %s144 = ssub.s32 %s18, %s34
    %s145 = sor.u32 %s143, %s144
    %p146 = scmp.eq.s32.totalorder %s145, 0
    %s148 = sadd.s32 %s147, 1
    %s149 = scalar_select %p146, %s147, %s148
    %p152 = pneg %p146
    %p153 = scmp.eq.s32.totalorder %s9, 7
    %p154 = por %p152, %p153
    %p155 = scmp.ne.s32.totalorder %s147, %s150
    %p156 = scmp.eq.s32.totalorder %s9, 0
    %p157 = por %p155, %p156
    %p158 = scmp.ne.s32.totalorder %s147, %s150
    %p159 = scmp.eq.s32.totalorder %s14, 7
    %p160 = por %p158, %p159
    %p161 = scmp.ne.s32.totalorder %s150, %s151
    %p162 = scmp.eq.s32.totalorder %s14, 0
    %p163 = por %p161, %p162
    %p164 = scmp.ne.s32.totalorder %s150, %s151
    %p165 = scmp.eq.s32.totalorder %s15, 7
    %p166 = por %p164, %p165
    %p168 = scmp.ne.s32.totalorder %s151, %s167
    %p169 = scmp.eq.s32.totalorder %s15, 0
    %p170 = por %p168, %p169
    %p171 = scmp.le.s32.totalorder 1, %s9
    %p172 = scmp.lt.s32.totalorder %s9, 9
    %p173 = pnand %p171, %p172
    %p174 = pneg %p173
    // Predicated region
    $region9: #{causal_self_attention_forward.4} parent=5 // pred_check
      _
    $region10: #{causal_self_attention_forward.4} parent=5 // pred_check_branch
      %176 = sbr.rel (%p173) target = $region12
    $region11: #{causal_self_attention_forward.4} parent=5 // pred_region
      %s177 = ssub.s32 %s9, 1
    $region12: #{causal_self_attention_forward.4} parent=5 // pred_fallthru
      _
    %p178 = scmp.lt.s32.totalorder %s9, 8
    // Predicated region
    $region13: #{causal_self_attention_forward.4} parent=5 // pred_check
      %p179 = pneg %p178
    $region14: #{causal_self_attention_forward.4} parent=5 // pred_check_branch
      %181 = sbr.rel (%p179) target = $region16
    $region15: #{causal_self_attention_forward.4} parent=5 // pred_region
      // Predicated region
      $region17: #{causal_self_attention_forward.4} parent=15 // pred_check
        %p182 = pneg %p59
      $region18: #{causal_self_attention_forward.4} parent=15 // pred_check_branch
        %184 = sbr.rel (%p182) target = $region20
      $region19: #{causal_self_attention_forward.4} parent=15 // pred_region
        %p185 = scmp.lt.s32.totalorder %s16, 1
        %s186 = scalar_select %p185, %s16, 1
        %p187 = scmp.lt.s32.totalorder %s17, 3
        %s188 = scalar_select %p187, %s17, 3
        %p189 = scmp.lt.s32.totalorder %s18, 0
        %s190 = scalar_select %p189, %s18, 0
        %s191 = sadd.s32 %s190, %s188
        %s192 = smul.addr %s186, 4
        %s193 = sadd.s32 %s191, %s192
        %s194 = smul.addr %s193, 8
        %s195 = scalar_lea.vmem %s0, %s194
      $region20: #{causal_self_attention_forward.4} parent=15 // pred_fallthru
        _
      // Predicated region
      $region21: #{causal_self_attention_forward.4} parent=15 // pred_check
        %p196 = pneg %p93
      $region22: #{causal_self_attention_forward.4} parent=15 // pred_check_branch
        %198 = sbr.rel (%p196) target = $region24
      $region23: #{causal_self_attention_forward.4} parent=15 // pred_region
        %p199 = scmp.lt.s32.totalorder %s19, %s18
        %s200 = scalar_select %p199, %s19, %s18
        %p201 = scmp.lt.s32.totalorder %s16, 1
        %s202 = scalar_select %p201, %s16, 1
        %p203 = scmp.lt.s32.totalorder %s17, 3
        %s204 = scalar_select %p203, %s17, 3
        %p205 = scmp.lt.s32.totalorder %s200, 0
        %s206 = scalar_select %p205, %s200, 0
        %s207 = sadd.s32 %s206, %s204
        %s208 = smul.addr %s202, 4
        %s209 = sadd.s32 %s207, %s208
        %s210 = smul.addr %s209, 8
        %s211 = scalar_lea.vmem %s1, %s210
        %p212 = scmp.lt.s32.totalorder %s19, %s18
        %s213 = scalar_select %p212, %s19, %s18
      $region24: #{causal_self_attention_forward.4} parent=15 // pred_fallthru
        _
      // Predicated region
      $region25: #{causal_self_attention_forward.4} parent=15 // pred_check
        %p214 = pneg %p127
      $region26: #{causal_self_attention_forward.4} parent=15 // pred_check_branch
        %216 = sbr.rel (%p214) target = $region28
      $region27: #{causal_self_attention_forward.4} parent=15 // pred_region
        %p217 = scmp.lt.s32.totalorder %s19, %s18
        %s218 = scalar_select %p217, %s19, %s18
        %p219 = scmp.lt.s32.totalorder %s16, 1
        %s220 = scalar_select %p219, %s16, 1
        %p221 = scmp.lt.s32.totalorder %s17, 3
        %s222 = scalar_select %p221, %s17, 3
        %p223 = scmp.lt.s32.totalorder %s218, 0
        %s224 = scalar_select %p223, %s218, 0
        %s225 = sadd.s32 %s224, %s222
        %s226 = smul.addr %s220, 4
        %s227 = sadd.s32 %s225, %s226
        %s228 = smul.addr %s227, 8
        %s229 = scalar_lea.vmem %s2, %s228
        %p230 = scmp.lt.s32.totalorder %s19, %s18
        %s231 = scalar_select %p230, %s19, %s18
      $region28: #{causal_self_attention_forward.4} parent=15 // pred_fallthru
        _
    $region16: #{causal_self_attention_forward.4} parent=5 // pred_fallthru
      _
    %p232 = scmp.le.s32.totalorder 1, %s9
    %p233 = scmp.lt.s32.totalorder %s9, 9
    %p234 = pnand %p232, %p233
    %p235 = pneg %p234
    // Predicated region
    $region29: #{causal_self_attention_forward.4} parent=5 // pred_check
      _
    $region30: #{causal_self_attention_forward.4} parent=5 // pred_check_branch
      %237 = sbr.rel (%p234) target = $region32
    $region31: #{causal_self_attention_forward.4} parent=5 // pred_region
      %s238 = ssub.s32 %s9, 1
      %p239 = scmp.lt.s32.totalorder %s20, 1
      %s240 = scalar_select %p239, %s20, 1
      %p241 = scmp.lt.s32.totalorder %s21, 3
      %s242 = scalar_select %p241, %s21, 3
      %p243 = scmp.lt.s32.totalorder %s22, 0
      %s244 = scalar_select %p243, %s22, 0
      %s245 = sadd.s32 %s244, %s242
      %s246 = smul.addr %s240, 4
      %s247 = sadd.s32 %s245, %s246
      %s248 = smul.addr %s247, 8
      %s249 = scalar_lea.vmem %s0, %s248
      %p250 = pneg %p65
      %p251 = pneg %p62
      %p252 = scmp.lt.s32.totalorder %s23, %s22
      %s253 = scalar_select %p252, %s23, %s22
      %p254 = scmp.lt.s32.totalorder %s20, 1
      %s255 = scalar_select %p254, %s20, 1
      %p256 = scmp.lt.s32.totalorder %s21, 3
      %s257 = scalar_select %p256, %s21, 3
      %p258 = scmp.lt.s32.totalorder %s253, 0
      %s259 = scalar_select %p258, %s253, 0
      %s260 = sadd.s32 %s259, %s257
      %s261 = smul.addr %s255, 4
      %s262 = sadd.s32 %s260, %s261
      %s263 = smul.addr %s262, 8
      %s264 = scalar_lea.vmem %s1, %s263
      %p265 = pneg %p99
      %p266 = pneg %p96
      %p267 = scmp.lt.s32.totalorder %s23, %s22
      %s268 = scalar_select %p267, %s23, %s22
      %p269 = scmp.lt.s32.totalorder %s20, 1
      %s270 = scalar_select %p269, %s20, 1
      %p271 = scmp.lt.s32.totalorder %s21, 3
      %s272 = scalar_select %p271, %s21, 3
      %p273 = scmp.lt.s32.totalorder %s268, 0
      %s274 = scalar_select %p273, %s268, 0
      %s275 = sadd.s32 %s274, %s272
      %s276 = smul.addr %s270, 4
      %s277 = sadd.s32 %s275, %s276
      %s278 = smul.addr %s277, 8
      %s279 = scalar_lea.vmem %s2, %s278
      %p280 = pneg %p133
      %p281 = pneg %p130
      %p282 = pneg %p163
      %p283 = pneg %p160
      %p284 = scmp.lt.s32.totalorder %s20, 1
      %s285 = scalar_select %p284, %s20, 1
      %p286 = scmp.lt.s32.totalorder %s21, 3
      %s287 = scalar_select %p286, %s21, 3
      %p288 = scmp.lt.s32.totalorder %s22, 0
      %s289 = scalar_select %p288, %s22, 0
      %s290 = sadd.s32 %s289, %s287
      %s291 = smul.addr %s285, 4
      %s292 = sadd.s32 %s290, %s291
      %s293 = smul.addr %s292, 8
      %s294 = scalar_lea.vmem %s3, %s293
      %p295 = scmp.lt.s32.totalorder %s20, 1
      %s296 = scalar_select %p295, %s20, 1
      %p297 = scmp.lt.s32.totalorder %s21, 3
      %s298 = scalar_select %p297, %s21, 3
      %p299 = scmp.lt.s32.totalorder %s22, 0
      %s300 = scalar_select %p299, %s22, 0
      %s301 = sadd.s32 %s300, %s298
      %s302 = smul.addr %s296, 4
      %s303 = sadd.s32 %s301, %s302
      %s304 = smul.addr %s303, 8
      %s305 = scalar_lea.vmem %s0, %s304
      %p306 = scmp.lt.s32.totalorder %s23, %s22
      %s307 = scalar_select %p306, %s23, %s22
      %p308 = scmp.lt.s32.totalorder %s20, 1
      %s309 = scalar_select %p308, %s20, 1
      %p310 = scmp.lt.s32.totalorder %s21, 3
      %s311 = scalar_select %p310, %s21, 3
      %p312 = scmp.lt.s32.totalorder %s307, 0
      %s313 = scalar_select %p312, %s307, 0
      %s314 = sadd.s32 %s313, %s311
      %s315 = smul.addr %s309, 4
      %s316 = sadd.s32 %s314, %s315
      %s317 = smul.addr %s316, 8
      %s318 = scalar_lea.vmem %s1, %s317
      %p319 = scmp.lt.s32.totalorder %s23, %s22
      %s320 = scalar_select %p319, %s23, %s22
      %p321 = scmp.lt.s32.totalorder %s23, %s22
      %s322 = scalar_select %p321, %s23, %s22
      %p323 = scmp.lt.s32.totalorder %s20, 1
      %s324 = scalar_select %p323, %s20, 1
      %p325 = scmp.lt.s32.totalorder %s21, 3
      %s326 = scalar_select %p325, %s21, 3
      %p327 = scmp.lt.s32.totalorder %s322, 0
      %s328 = scalar_select %p327, %s322, 0
      %s329 = sadd.s32 %s328, %s326
      %s330 = smul.addr %s324, 4
      %s331 = sadd.s32 %s329, %s330
      %s332 = smul.addr %s331, 8
      %s333 = scalar_lea.vmem %s2, %s332
      %p334 = scmp.lt.s32.totalorder %s23, %s22
      %s335 = scalar_select %p334, %s23, %s22
      %p336 = scmp.lt.s32.totalorder %s20, 1
      %s337 = scalar_select %p336, %s20, 1
      %p338 = scmp.lt.s32.totalorder %s21, 3
      %s339 = scalar_select %p338, %s21, 3
      %p340 = scmp.lt.s32.totalorder %s22, 0
      %s341 = scalar_select %p340, %s22, 0
      %s342 = sadd.s32 %s341, %s339
      %s343 = smul.addr %s337, 4
      %s344 = sadd.s32 %s342, %s343
      %s345 = smul.addr %s344, 8
      %s346 = scalar_lea.vmem %s3, %s345
      %p347 = scmp.eq.s32.totalorder %s23, 0
      // Predicated region
      $region33: #{causal_self_attention_forward.4} parent=31 // pred_check
        %p348 = pneg %p347
      $region34: #{causal_self_attention_forward.4} parent=31 // pred_check_branch
        %350 = sbr.rel (%p348) target = $region36
      $region35: #{causal_self_attention_forward.4} parent=31 // pred_region
        %vm351 = vcmask 7168
        %352 = vst.msk [vmem:[#allocation2] sm:$0xff] %vm351, -inf
        %353 = vst.msk [vmem:[#allocation3] sm:$0xff] %vm351, 0.0
        %vm354 = vcmask 64512
        %355 = vst.msk [vmem:[#allocation4] sm:$0xff] %vm354, 0.0
      $region36: #{causal_self_attention_forward.4} parent=31 // pred_fallthru
        _
      %p356 = scmp.lt.s32.totalorder %s23, %s22
      // Predicated region
      $region37: #{causal_self_attention_forward.4} parent=31 // pred_check
        %p357 = pneg %p356
      $region38: #{causal_self_attention_forward.4} parent=31 // pred_check_branch
        %359 = sbr.rel (%p357) target = $region40
      $region39: #{causal_self_attention_forward.4} parent=31 // pred_region
        %v360 = vld [vmem:[%s305] sm:$0xff]
        %v361 = vmul.f32 %v360, 0.35355338
        %v362 = vld [vmem:[%s318] sm:$0xff]
        %vm363 = vcmask 64512
        %v365 = vsel %vm363, %v361, 0
        %v368 = vsel %vm363, %v362, 0
        %370 = vmatprep.subr.mxu0 0.0
        %371 = vmatpush1.xpose.msra.mxu0 %v368
        %372 = vmatprep.subr.mxu0 0.0
        %373 = vmatpush1.xpose.msra.mxu0 0.0
        %374 = vmatprep.subr.mxu0 0.0
        %375 = vmatpush1.xpose.msra.mxu0 0.0
        %376 = vmatprep.subr.mxu0 0.0
        %377 = vmatpush1.xpose.msra.mxu0 0.0
        %378 = vmatprep.subr.mxu0 0.0
        %379 = vmatpush1.xpose.msra.mxu0 0.0
        %380 = vmatprep.subr.mxu0 0.0
        %381 = vmatpush1.xpose.msra.mxu0 0.0
        %382 = vmatprep.subr.mxu0 0.0
        %383 = vmatpush1.xpose.msra.mxu0 0.0
        %384 = vmatprep.subr.mxu0 0.0
        %385 = vmatpush1.xpose.msra.mxu0 0.0
        %386 = vmatprep.subr.mxu0 0.0
        %387 = vmatpush1.xpose.msra.mxu0 0.0
        %388 = vmatprep.subr.mxu0 0.0
        %389 = vmatpush1.xpose.msra.mxu0 0.0
        %390 = vmatprep.subr.mxu0 0.0
        %391 = vmatpush1.xpose.msra.mxu0 0.0
        %392 = vmatprep.subr.mxu0 0.0
        %393 = vmatpush1.xpose.msra.mxu0 0.0
        %394 = vmatprep.subr.mxu0 0.0
        %395 = vmatpush1.xpose.msra.mxu0 0.0
        %396 = vmatprep.subr.mxu0 0.0
        %397 = vmatpush1.xpose.msra.mxu0 0.0
        %398 = vmatprep.subr.mxu0 0.0
        %399 = vmatpush1.xpose.msra.mxu0 0.0
        %400 = vmatprep.subr.mxu0 0.0
        %401 = vmatpush1.xpose.msra.mxu0 0.0
        %402 = vmatprep.subr.mxu0 0.0
        %403 = vmatpush1.xpose.msra.mxu0 0.0
        %404 = vmatprep.subr.mxu0 0.0
        %405 = vmatpush1.xpose.msra.mxu0 0.0
        %406 = vmatprep.subr.mxu0 0.0
        %407 = vmatpush1.xpose.msra.mxu0 0.0
        %408 = vmatprep.subr.mxu0 0.0
        %409 = vmatpush1.xpose.msra.mxu0 0.0
        %410 = vmatprep.subr.mxu0 0.0
        %411 = vmatpush1.xpose.msra.mxu0 0.0
        %412 = vmatprep.subr.mxu0 0.0
        %413 = vmatpush1.xpose.msra.mxu0 0.0
        %414 = vmatprep.subr.mxu0 0.0
        %415 = vmatpush1.xpose.msra.mxu0 0.0
        %416 = vmatprep.subr.mxu0 0.0
        %417 = vmatpush1.xpose.msra.mxu0 0.0
        %418 = vmatprep.subr.mxu0 0.0
        %419 = vmatpush1.xpose.msra.mxu0 0.0
        %420 = vmatprep.subr.mxu0 0.0
        %421 = vmatpush1.xpose.msra.mxu0 0.0
        %422 = vmatprep.subr.mxu0 0.0
        %423 = vmatpush1.xpose.msra.mxu0 0.0
        %424 = vmatprep.subr.mxu0 0.0
        %425 = vmatpush1.xpose.msra.mxu0 0.0
        %426 = vmatprep.subr.mxu0 0.0
        %427 = vmatpush1.xpose.msra.mxu0 0.0
        %428 = vmatprep.subr.mxu0 0.0
        %429 = vmatpush1.xpose.msra.mxu0 0.0
        %430 = vmatprep.subr.mxu0 0.0
        %431 = vmatpush1.xpose.msra.mxu0 0.0
        %432 = vmatprep.subr.mxu0 0.0
        %433 = vmatpush1.xpose.msra.mxu0 0.0
        %434 = vmatprep.mubr.f32.mxu0 0.0
        %435 = vmatmul.mubr.f32.gmra.mrb[0].mxu0 %v365
        %v436 = vpop.f32.mrb[0].mxu0
        %v437 = vadd.f32 0.0, %v436
        %v438 = vpop.f32.mrb[0].mxu0
        %439 = vdwg.mxu0
        %v440 = vld [vmem:[#allocation2] sm:$0xff]
        %v441 = vsel %vm363, %v437, -inf
        %442 = vmax.xlane.f32.xlu0 %v441
        %v443 = vpop.xlane.xlu0 %442
        %v444 = vmax.f32 %v440, %v443
        %v445 = vsub.f32 %v440, %v444
        %v446 = vmul.f32 %v445, 1.442695
        %v447 = vpow.pop %v446
        %449 = vset.pattern.permute.xlu0 0
        %450 = vperm.xlu0 %449, %v444
        %v451 = vpop.permute.xlu0 %450
        %v453 = vsub.f32 %v437, %v451
        %v454 = vmul.f32 %v453, 1.442695
        %v455 = vpow.pop %v454
        %v456 = vld [vmem:[#allocation3] sm:$0xff]
        %v457 = vmul.f32 %v447, %v456
        %v458 = vsel %vm363, %v455, 0.0
        %459 = vadd.xlane.f32.xlu0 %v458
        %v460 = vpop.xlane.xlu0 %459
        %v461 = vadd.f32 %v457, %v460
        %vm462 = vcmask 7168
        %463 = vst.msk [vmem:[#allocation3] sm:$0xff] %vm462, %v461
        %v464 = vld [vmem:[#allocation4] sm:$0xff]
        %466 = vset.pattern.permute.xlu0 0
        %467 = vperm.xlu0 %466, %v447
        %v468 = vpop.permute.xlu0 %467
        %v470 = vmul.f32 %v468, %v464
        %v471 = vld [vmem:[%s333] sm:$0xff]
        %v473 = vsel %vm363, %v455, 0
        %475 = vmatprep.subr.mxu0 0.0
        %476 = vmatpush1.msra.mxu0 %v471
        %477 = vmatprep.subr.mxu0 0.0
        %478 = vmatpush1.msra.mxu0 0.0
        %479 = vmatprep.subr.mxu0 0.0
        %480 = vmatpush1.msra.mxu0 0.0
        %481 = vmatprep.subr.mxu0 0.0
        %482 = vmatpush1.msra.mxu0 0.0
        %483 = vmatprep.subr.mxu0 0.0
        %484 = vmatpush1.msra.mxu0 0.0
        %485 = vmatprep.subr.mxu0 0.0
        %486 = vmatpush1.msra.mxu0 0.0
        %487 = vmatprep.subr.mxu0 0.0
        %488 = vmatpush1.msra.mxu0 0.0
        %489 = vmatprep.subr.mxu0 0.0
        %490 = vmatpush1.msra.mxu0 0.0
        %491 = vmatprep.subr.mxu0 0.0
        %492 = vmatpush1.msra.mxu0 0.0
        %493 = vmatprep.subr.mxu0 0.0
        %494 = vmatpush1.msra.mxu0 0.0
        %495 = vmatprep.subr.mxu0 0.0
        %496 = vmatpush1.msra.mxu0 0.0
        %497 = vmatprep.subr.mxu0 0.0
        %498 = vmatpush1.msra.mxu0 0.0
        %499 = vmatprep.subr.mxu0 0.0
        %500 = vmatpush1.msra.mxu0 0.0
        %501 = vmatprep.subr.mxu0 0.0
        %502 = vmatpush1.msra.mxu0 0.0
        %503 = vmatprep.subr.mxu0 0.0
        %504 = vmatpush1.msra.mxu0 0.0
        %505 = vmatprep.subr.mxu0 0.0
        %506 = vmatpush1.msra.mxu0 0.0
        %507 = vmatprep.subr.mxu0 0.0
        %508 = vmatpush1.msra.mxu0 0.0
        %509 = vmatprep.subr.mxu0 0.0
        %510 = vmatpush1.msra.mxu0 0.0
        %511 = vmatprep.subr.mxu0 0.0
        %512 = vmatpush1.msra.mxu0 0.0
        %513 = vmatprep.subr.mxu0 0.0
        %514 = vmatpush1.msra.mxu0 0.0
        %515 = vmatprep.subr.mxu0 0.0
        %516 = vmatpush1.msra.mxu0 0.0
        %517 = vmatprep.subr.mxu0 0.0
        %518 = vmatpush1.msra.mxu0 0.0
        %519 = vmatprep.subr.mxu0 0.0
        %520 = vmatpush1.msra.mxu0 0.0
        %521 = vmatprep.subr.mxu0 0.0
        %522 = vmatpush1.msra.mxu0 0.0
        %523 = vmatprep.subr.mxu0 0.0
        %524 = vmatpush1.msra.mxu0 0.0
        %525 = vmatprep.subr.mxu0 0.0
        %526 = vmatpush1.msra.mxu0 0.0
        %527 = vmatprep.subr.mxu0 0.0
        %528 = vmatpush1.msra.mxu0 0.0
        %529 = vmatprep.subr.mxu0 0.0
        %530 = vmatpush1.msra.mxu0 0.0
        %531 = vmatprep.subr.mxu0 0.0
        %532 = vmatpush1.msra.mxu0 0.0
        %533 = vmatprep.subr.mxu0 0.0
        %534 = vmatpush1.msra.mxu0 0.0
        %535 = vmatprep.subr.mxu0 0.0
        %536 = vmatpush1.msra.mxu0 0.0
        %537 = vmatprep.subr.mxu0 0.0
        %538 = vmatpush1.msra.mxu0 0.0
        %539 = vmatprep.mubr.f32.mxu0 0.0
        %540 = vmatmul.mubr.f32.gmra.mrb[0].mxu0 %v473
        %v541 = vpop.f32.mrb[0].mxu0
        %v542 = vadd.f32 0.0, %v541
        %v543 = vpop.f32.mrb[0].mxu0
        %544 = vdwg.mxu0
        %v545 = vadd.f32 %v470, %v542
        %546 = vst.msk [vmem:[#allocation4] sm:$0xff] %vm363, %v545
        %547 = vst.msk [vmem:[#allocation2] sm:$0xff] %vm462, %v444
      $region40: #{causal_self_attention_forward.4} parent=31 // pred_fallthru
        _
      %p548 = scmp.eq.s32.totalorder %s23, %s22
      // Predicated region
      $region41: #{causal_self_attention_forward.4} parent=31 // pred_check
        %p549 = pneg %p548
      $region42: #{causal_self_attention_forward.4} parent=31 // pred_check_branch
        %551 = sbr.rel (%p549) target = $region44
      $region43: #{causal_self_attention_forward.4} parent=31 // pred_region
        %v552 = vld [vmem:[%s305] sm:$0xff]
        %v553 = vmul.f32 %v552, 0.35355338
        %v554 = vld [vmem:[%s318] sm:$0xff]
        %vm555 = vcmask 64512
        %v557 = vsel %vm555, %v553, 0
        %v560 = vsel %vm555, %v554, 0
        %562 = vmatprep.subr.mxu0 0.0
        %563 = vmatpush1.xpose.msra.mxu0 %v560
        %564 = vmatprep.subr.mxu0 0.0
        %565 = vmatpush1.xpose.msra.mxu0 0.0
        %566 = vmatprep.subr.mxu0 0.0
        %567 = vmatpush1.xpose.msra.mxu0 0.0
        %568 = vmatprep.subr.mxu0 0.0
        %569 = vmatpush1.xpose.msra.mxu0 0.0
        %570 = vmatprep.subr.mxu0 0.0
        %571 = vmatpush1.xpose.msra.mxu0 0.0
        %572 = vmatprep.subr.mxu0 0.0
        %573 = vmatpush1.xpose.msra.mxu0 0.0
        %574 = vmatprep.subr.mxu0 0.0
        %575 = vmatpush1.xpose.msra.mxu0 0.0
        %576 = vmatprep.subr.mxu0 0.0
        %577 = vmatpush1.xpose.msra.mxu0 0.0
        %578 = vmatprep.subr.mxu0 0.0
        %579 = vmatpush1.xpose.msra.mxu0 0.0
        %580 = vmatprep.subr.mxu0 0.0
        %581 = vmatpush1.xpose.msra.mxu0 0.0
        %582 = vmatprep.subr.mxu0 0.0
        %583 = vmatpush1.xpose.msra.mxu0 0.0
        %584 = vmatprep.subr.mxu0 0.0
        %585 = vmatpush1.xpose.msra.mxu0 0.0
        %586 = vmatprep.subr.mxu0 0.0
        %587 = vmatpush1.xpose.msra.mxu0 0.0
        %588 = vmatprep.subr.mxu0 0.0
        %589 = vmatpush1.xpose.msra.mxu0 0.0
        %590 = vmatprep.subr.mxu0 0.0
        %591 = vmatpush1.xpose.msra.mxu0 0.0
        %592 = vmatprep.subr.mxu0 0.0
        %593 = vmatpush1.xpose.msra.mxu0 0.0
        %594 = vmatprep.subr.mxu0 0.0
        %595 = vmatpush1.xpose.msra.mxu0 0.0
        %596 = vmatprep.subr.mxu0 0.0
        %597 = vmatpush1.xpose.msra.mxu0 0.0
        %598 = vmatprep.subr.mxu0 0.0
        %599 = vmatpush1.xpose.msra.mxu0 0.0
        %600 = vmatprep.subr.mxu0 0.0
        %601 = vmatpush1.xpose.msra.mxu0 0.0
        %602 = vmatprep.subr.mxu0 0.0
        %603 = vmatpush1.xpose.msra.mxu0 0.0
        %604 = vmatprep.subr.mxu0 0.0
        %605 = vmatpush1.xpose.msra.mxu0 0.0
        %606 = vmatprep.subr.mxu0 0.0
        %607 = vmatpush1.xpose.msra.mxu0 0.0
        %608 = vmatprep.subr.mxu0 0.0
        %609 = vmatpush1.xpose.msra.mxu0 0.0
        %610 = vmatprep.subr.mxu0 0.0
        %611 = vmatpush1.xpose.msra.mxu0 0.0
        %612 = vmatprep.subr.mxu0 0.0
        %613 = vmatpush1.xpose.msra.mxu0 0.0
        %614 = vmatprep.subr.mxu0 0.0
        %615 = vmatpush1.xpose.msra.mxu0 0.0
        %616 = vmatprep.subr.mxu0 0.0
        %617 = vmatpush1.xpose.msra.mxu0 0.0
        %618 = vmatprep.subr.mxu0 0.0
        %619 = vmatpush1.xpose.msra.mxu0 0.0
        %620 = vmatprep.subr.mxu0 0.0
        %621 = vmatpush1.xpose.msra.mxu0 0.0
        %622 = vmatprep.subr.mxu0 0.0
        %623 = vmatpush1.xpose.msra.mxu0 0.0
        %624 = vmatprep.subr.mxu0 0.0
        %625 = vmatpush1.xpose.msra.mxu0 0.0
        %626 = vmatprep.mubr.f32.mxu0 0.0
        %627 = vmatmul.mubr.f32.gmra.mrb[0].mxu0 %v557
        %v628 = vpop.f32.mrb[0].mxu0
        %v629 = vadd.f32 0.0, %v628
        %v630 = vpop.f32.mrb[0].mxu0
        %631 = vdwg.mxu0
        %s632 = smul.u32 %s22, 8
        %v633 = vlaneseq
        %v634 = vshrl.u32 %v633, 7
        %v635 = vstv %s632
        %v636 = vadd.s32 %v635, %v634
        %s637 = smul.u32 %s23, 8
        %v638 = vlaneseq
        %v639 = vand.u32 %v638, 127
        %v640 = vstv %s637
        %v641 = vadd.s32 %v640, %v639
        %vm642 = vcmp.le.s32.totalorder %v641, %v636
        %v643 = vsel %vm642, %v629, -inf
        %v644 = vld [vmem:[#allocation2] sm:$0xff]
        %v645 = vsel %vm555, %v643, -inf
        %646 = vmax.xlane.f32.xlu0 %v645
        %v647 = vpop.xlane.xlu0 %646
        %v648 = vmax.f32 %v644, %v647
        %v649 = vsub.f32 %v644, %v648
        %v650 = vmul.f32 %v649, 1.442695
        %v651 = vpow.pop %v650
        %653 = vset.pattern.permute.xlu0 0
        %654 = vperm.xlu0 %653, %v648
        %v655 = vpop.permute.xlu0 %654
        %v657 = vsub.f32 %v643, %v655
        %v658 = vmul.f32 %v657, 1.442695
        %v659 = vpow.pop %v658
        %v660 = vld [vmem:[#allocation3] sm:$0xff]
        %v661 = vmul.f32 %v651, %v660
        %v662 = vsel %vm555, %v659, 0.0
        %663 = vadd.xlane.f32.xlu0 %v662
        %v664 = vpop.xlane.xlu0 %663
        %v665 = vadd.f32 %v661, %v664
        %vm666 = vcmask 7168
        %667 = vst.msk [vmem:[#allocation3] sm:$0xff] %vm666, %v665
        %v668 = vld [vmem:[#allocation4] sm:$0xff]
        %670 = vset.pattern.permute.xlu0 0
        %671 = vperm.xlu0 %670, %v651
        %v672 = vpop.permute.xlu0 %671
        %v674 = vmul.f32 %v672, %v668
        %v675 = vld [vmem:[%s333] sm:$0xff]
        %v677 = vsel %vm555, %v659, 0
        %679 = vmatprep.subr.mxu0 0.0
        %680 = vmatpush1.msra.mxu0 %v675
        %681 = vmatprep.subr.mxu0 0.0
        %682 = vmatpush1.msra.mxu0 0.0
        %683 = vmatprep.subr.mxu0 0.0
        %684 = vmatpush1.msra.mxu0 0.0
        %685 = vmatprep.subr.mxu0 0.0
        %686 = vmatpush1.msra.mxu0 0.0
        %687 = vmatprep.subr.mxu0 0.0
        %688 = vmatpush1.msra.mxu0 0.0
        %689 = vmatprep.subr.mxu0 0.0
        %690 = vmatpush1.msra.mxu0 0.0
        %691 = vmatprep.subr.mxu0 0.0
        %692 = vmatpush1.msra.mxu0 0.0
        %693 = vmatprep.subr.mxu0 0.0
        %694 = vmatpush1.msra.mxu0 0.0
        %695 = vmatprep.subr.mxu0 0.0
        %696 = vmatpush1.msra.mxu0 0.0
        %697 = vmatprep.subr.mxu0 0.0
        %698 = vmatpush1.msra.mxu0 0.0
        %699 = vmatprep.subr.mxu0 0.0
        %700 = vmatpush1.msra.mxu0 0.0
        %701 = vmatprep.subr.mxu0 0.0
        %702 = vmatpush1.msra.mxu0 0.0
        %703 = vmatprep.subr.mxu0 0.0
        %704 = vmatpush1.msra.mxu0 0.0
        %705 = vmatprep.subr.mxu0 0.0
        %706 = vmatpush1.msra.mxu0 0.0
        %707 = vmatprep.subr.mxu0 0.0
        %708 = vmatpush1.msra.mxu0 0.0
        %709 = vmatprep.subr.mxu0 0.0
        %710 = vmatpush1.msra.mxu0 0.0
        %711 = vmatprep.subr.mxu0 0.0
        %712 = vmatpush1.msra.mxu0 0.0
        %713 = vmatprep.subr.mxu0 0.0
        %714 = vmatpush1.msra.mxu0 0.0
        %715 = vmatprep.subr.mxu0 0.0
        %716 = vmatpush1.msra.mxu0 0.0
        %717 = vmatprep.subr.mxu0 0.0
        %718 = vmatpush1.msra.mxu0 0.0
        %719 = vmatprep.subr.mxu0 0.0
        %720 = vmatpush1.msra.mxu0 0.0
        %721 = vmatprep.subr.mxu0 0.0
        %722 = vmatpush1.msra.mxu0 0.0
        %723 = vmatprep.subr.mxu0 0.0
        %724 = vmatpush1.msra.mxu0 0.0
        %725 = vmatprep.subr.mxu0 0.0
        %726 = vmatpush1.msra.mxu0 0.0
        %727 = vmatprep.subr.mxu0 0.0
        %728 = vmatpush1.msra.mxu0 0.0
        %729 = vmatprep.subr.mxu0 0.0
        %730 = vmatpush1.msra.mxu0 0.0
        %731 = vmatprep.subr.mxu0 0.0
        %732 = vmatpush1.msra.mxu0 0.0
        %733 = vmatprep.subr.mxu0 0.0
        %734 = vmatpush1.msra.mxu0 0.0
        %735 = vmatprep.subr.mxu0 0.0
        %736 = vmatpush1.msra.mxu0 0.0
        %737 = vmatprep.subr.mxu0 0.0
        %738 = vmatpush1.msra.mxu0 0.0
        %739 = vmatprep.subr.mxu0 0.0
        %740 = vmatpush1.msra.mxu0 0.0
        %741 = vmatprep.subr.mxu0 0.0
        %742 = vmatpush1.msra.mxu0 0.0
        %743 = vmatprep.mubr.f32.mxu0 0.0
        %744 = vmatmul.mubr.f32.gmra.mrb[0].mxu0 %v677
        %v745 = vpop.f32.mrb[0].mxu0
        %v746 = vadd.f32 0.0, %v745
        %v747 = vpop.f32.mrb[0].mxu0
        %748 = vdwg.mxu0
        %v749 = vadd.f32 %v674, %v746
        %750 = vst.msk [vmem:[#allocation4] sm:$0xff] %vm555, %v749
        %751 = vst.msk [vmem:[#allocation2] sm:$0xff] %vm666, %v648
        %v752 = vld [vmem:[#allocation3] sm:$0xff]
        %v753 = vrcp.pop %v752
        %v754 = vld [vmem:[#allocation4] sm:$0xff]
        %756 = vset.pattern.permute.xlu0 0
        %757 = vperm.xlu0 %756, %v753
        %v758 = vpop.permute.xlu0 %757
        %v760 = vmul.f32 %v754, %v758
        %761 = vst.msk [vmem:[%s346] sm:$0xff] %vm555, %v760
      $region44: #{causal_self_attention_forward.4} parent=31 // pred_fallthru
        _
      %p762 = scmp.lt.s32.totalorder %s20, 1
      %s763 = scalar_select %p762, %s20, 1
      %p764 = scmp.lt.s32.totalorder %s21, 3
      %s765 = scalar_select %p764, %s21, 3
      %p766 = scmp.lt.s32.totalorder %s22, 0
      %s767 = scalar_select %p766, %s22, 0
      %s768 = sadd.s32 %s767, %s765
      %s769 = smul.addr %s763, 4
      %s770 = sadd.s32 %s768, %s769
      %s771 = smul.addr %s770, 8
      %s772 = scalar_lea.vmem %s3, %s771
      // Predicated region
      $region45: #{causal_self_attention_forward.4} parent=31 // pred_check
        %p773 = pneg %p160
      $region46: #{causal_self_attention_forward.4} parent=31 // pred_check_branch
        %775 = sbr.rel (%p773) target = $region48
      $region47: #{causal_self_attention_forward.4} parent=31 // pred_region
        _
      $region48: #{causal_self_attention_forward.4} parent=31 // pred_fallthru
        _
    $region32: #{causal_self_attention_forward.4} parent=5 // pred_fallthru
      _
    %p776 = scmp.le.s32.totalorder 2, %s9
    // Predicated region
    $region49: #{causal_self_attention_forward.4} parent=5 // pred_check
      %p777 = pneg %p776
    $region50: #{causal_self_attention_forward.4} parent=5 // pred_check_branch
      %779 = sbr.rel (%p777) target = $region52
    $region51: #{causal_self_attention_forward.4} parent=5 // pred_region
      %s780 = ssub.s32 %s9, 2
      // Predicated region
      $region53: #{causal_self_attention_forward.4} parent=51 // pred_check
        %p781 = pneg %p166
      $region54: #{causal_self_attention_forward.4} parent=51 // pred_check_branch
        %783 = sbr.rel (%p781) target = $region56
      $region55: #{causal_self_attention_forward.4} parent=51 // pred_region
        %p784 = scmp.lt.s32.totalorder %s24, 1
        %s785 = scalar_select %p784, %s24, 1
        %p786 = scmp.lt.s32.totalorder %s25, 3
        %s787 = scalar_select %p786, %s25, 3
        %p788 = scmp.lt.s32.totalorder %s26, 0
        %s789 = scalar_select %p788, %s26, 0
        %s790 = sadd.s32 %s789, %s787
        %s791 = smul.addr %s785, 4
        %s792 = sadd.s32 %s790, %s791
        %s793 = smul.addr %s792, 8
        %s794 = scalar_lea.vmem %s3, %s793
      $region56: #{causal_self_attention_forward.4} parent=51 // pred_fallthru
        _
    $region52: #{causal_self_attention_forward.4} parent=5 // pred_fallthru
      _
  $region6: #{causal_self_attention_forward.4} parent=0 // loop_footer
    %s13 = sadd.s32 1, %s9
  $region7: #{causal_self_attention_forward.4} parent=0 // loop_footer_branch
    %8 = sbr.rel target = $region3
  $region8: #{causal_self_attention_forward.4} parent=0 // loop_exit
    _

</llo_original>
